<compile_context>
chip_gen: v7x
topology: tpu7x:2x2x1
jax: 0.10.0
libtpu: 0.0.40
codegen_flags: <defaults>
</compile_context>

<pallas_src>
import functools

import jax
import jax.numpy as jnp
from jax import lax
from jax.experimental import pallas as pl
from jax.experimental.pallas import tpu as pltpu


def _round_up(x, m):
    return (x + m - 1) // m * m


def _chip_config():
    """Generation-aware tiling / dtype choices (safe fallback if unknown)."""
    kind = ""
    try:
        kind = jax.devices()[0].device_kind.lower()
    except Exception:
        pass
    if "v7" in kind:
        # 64 MiB physical VMEM per TC: keep tiles + scoped limit conservative.
        return dict(w_dtype=jnp.bfloat16, q_tile_max=256, hw_tile_max=2048,
                    vmem_limit=40 * 1024 * 1024)
    if "v6" in kind:
        # bf16 VALUs + 128 MiB VMEM: bigger HW tiles cut feature re-streaming.
        return dict(w_dtype=jnp.bfloat16, q_tile_max=256, hw_tile_max=4096,
                    vmem_limit=64 * 1024 * 1024)
    if "v5" in kind or "v4" in kind:
        # no bf16 VPU: build weights in f32; 128 MiB VMEM allows big tiles.
        return dict(w_dtype=jnp.float32, q_tile_max=256, hw_tile_max=4096,
                    vmem_limit=64 * 1024 * 1024)
    return dict(w_dtype=jnp.float32, q_tile_max=256, hw_tile_max=2048,
                vmem_limit=40 * 1024 * 1024)


# ---------------------------------------------------------------------------
# Kernel 1: tiled bilinear grid_sample (zeros padding, align_corners=False)
# gather implemented as a fused one-hot-weight matmul on the MXU (canonical
# [Qt, HWt] x [HWt, C] orientation), accumulation directly into out_ref.
# ---------------------------------------------------------------------------
def _grid_sample_kernel(grid_ref, feat_ref, out_ref, *, Hin, Win, w_dtype):
    """One (image n, Q-tile qi, HW-tile hi) grid step.

    grid_ref: [1, q_tile, 2]      f32   sampling locations in [-1, 1] (x, y)
    feat_ref: [1, hw_tile, C]     bf16  flattened feature tile (lanes = C)
    out_ref : [1, q_tile, C]      f32   resident across hi; accumulated into
    """
    hi = pl.program_id(2)
    hw_tile = feat_ref.shape[1]

    @pl.when(hi == 0)
    def _():
        out_ref[...] = jnp.zeros_like(out_ref)

    g = grid_ref[0]                              # [q_tile, 2]
    q_tile = g.shape[0]
    x = g[:, 0:1]
    y = g[:, 1:2]
    # align_corners=False mapping from [-1, 1] to pixel coordinates.
    ix = ((x + 1.0) * Win - 1.0) * 0.5
    iy = ((y + 1.0) * Hin - 1.0) * 0.5
    ix0 = jnp.floor(ix)
    iy0 = jnp.floor(iy)
    ix1 = ix0 + 1.0
    iy1 = iy0 + 1.0
    wx1 = ix - ix0
    wx0 = 1.0 - wx1
    wy1 = iy - iy0
    wy0 = 1.0 - wy1

    # Per-corner validity folded into the tiny [q_tile, 1] weights *before*
    # any lane-wide op. This is what prevents row-wrap aliasing (e.g. ix0=-1
    # mapping flat00 onto pixel (iy0-1, W-1)) and hits into the zero-padded
    # HW tail — do not hoist it out of the per-corner weights.
    vx0 = (ix0 >= 0.0) & (ix0 <= Win - 1.0)
    vx1 = (ix1 >= 0.0) & (ix1 <= Win - 1.0)
    vy0 = (iy0 >= 0.0) & (iy0 <= Hin - 1.0)
    vy1 = (iy1 >= 0.0) & (iy1 <= Hin - 1.0)
    w00 = jnp.where(vy0 & vx0, wy0 * wx0, 0.0).astype(w_dtype)   # [q_tile, 1]
    w01 = jnp.where(vy0 & vx1, wy0 * wx1, 0.0).astype(w_dtype)
    w10 = jnp.where(vy1 & vx0, wy1 * wx0, 0.0).astype(w_dtype)
    w11 = jnp.where(vy1 & vx1, wy1 * wx1, 0.0).astype(w_dtype)

    # Lane distance from the (iy0, ix0) corner, relative to this HW tile.
    # hw_base is subtracted from the tiny flat00, not added to the iota.
    flat00 = (iy0 * Win + ix0).astype(jnp.int32) - hi * hw_tile   # [q_tile, 1]
    lane = lax.broadcasted_iota(jnp.int32, (q_tile, hw_tile), 1)
    d = lane - flat00                                             # [q_tile, hw_tile]

    zero = jnp.zeros((), w_dtype)
    # Additive fused one-hot: corners live at d in {0, 1, Win, Win+1}. The
    # additive form stays correct even when Win == 1 (d==1 and d==Win
    # coincide) because the invalid corner's weight is exactly 0.
    w_mat = (jnp.where(d == 0, w00, zero) +
             jnp.where(d == 1, w01, zero) +
             jnp.where(d == Win, w10, zero) +
             jnp.where(d == Win + 1, w11, zero))                  # [q_tile, hw_tile]

    # Canonical MXU form: out[Qt, C] += w_mat[Qt, HWt] . feat[HWt, C],
    # bf16 operands, f32 accumulate directly into the resident output block.
    out_ref[0] += jnp.dot(w_mat.astype(jnp.bfloat16), feat_ref[0],
                          preferred_element_type=jnp.float32)


def _grid_sample_qc(imgfeat, grid_q2, *, q_tile_max=None, hw_tile_max=None):
    """imgfeat: [N, C, H, W], grid_q2: [N, Q, 2] -> [N, Q, C] float32.

    Tiling: q_tile multiple of 8, hw_tile multiple of 128; the HW reduction
    axis is the last, "arbitrary" grid axis; N and Q tiles are "parallel".
    Feature is streamed once per Q tile as a [hw_tile, C] bf16 slab.
    """
    N, C, H, W = imgfeat.shape
    Q = grid_q2.shape[1]
    HW = H * W
    # flat index is computed in f32 inside the kernel; exact while HW < 2^24.
    assert HW < (1 << 24), "feature map too large for f32 flat indexing"

    cfg = _chip_config()
    if q_tile_max is None:
        q_tile_max = cfg["q_tile_max"]
    if hw_tile_max is None:
        hw_tile_max = cfg["hw_tile_max"]

    q_tile = min(q_tile_max, _round_up(Q, 8))
    Qp = _round_up(Q, q_tile)
    hw_tile = min(hw_tile_max, _round_up(HW, 128))
    HWp = _round_up(HW, hw_tile)

    # single bf16 down-cast + [N, HW, C] layout pass (canonical MXU RHS);
    # halves repeated feature DMA and avoids per-step RHS transposes.
    feat = jnp.transpose(imgfeat.astype(jnp.bfloat16), (0, 2, 3, 1))
    feat = feat.reshape(N, HW, C)
    if HWp != HW:
        feat = jnp.pad(feat, ((0, 0), (0, HWp - HW), (0, 0)))
    grid = grid_q2.astype(jnp.float32)
    if Qp != Q:
        # padded queries sample out of range -> all-zero rows, sliced off below
        grid = jnp.pad(grid, ((0, 0), (0, Qp - Q), (0, 0)), constant_values=-2.0)

    kernel = functools.partial(_grid_sample_kernel, Hin=H, Win=W,
                               w_dtype=cfg["w_dtype"])
    out = pl.pallas_call(
        kernel,
        out_shape=jax.ShapeDtypeStruct((N, Qp, C), jnp.float32),
        grid_spec=pltpu.PrefetchScalarGridSpec(
            num_scalar_prefetch=0,
            grid=(N, Qp // q_tile, HWp // hw_tile),
            in_specs=[
                pl.BlockSpec((1, q_tile, 2), lambda n, qi, hi: (n, qi, 0)),
                pl.BlockSpec((1, hw_tile, C), lambda n, qi, hi: (n, hi, 0)),
            ],
            out_specs=pl.BlockSpec((1, q_tile, C), lambda n, qi, hi: (n, qi, 0)),
        ),
        compiler_params=pltpu.CompilerParams(
            dimension_semantics=("parallel", "parallel", "arbitrary"),
            vmem_limit_bytes=cfg["vmem_limit"],
        ),
    )(grid, feat)
    return out[:, :Q, :]


def grid_sample_bilinear(imgfeat, grid):
    """imgfeat: [N, C, Hin, Win], grid: [N, Hout, Wout, 2] -> [N, C, Hout, Wout]."""
    N, C, Hin, Win = imgfeat.shape
    _, Hout, Wout, _ = grid.shape
    out_qc = _grid_sample_qc(imgfeat, grid.reshape(N, Hout * Wout, 2))
    out = jnp.transpose(out_qc, (0, 2, 1)).reshape(N, C, Hout, Wout)
    return out.astype(imgfeat.dtype)


# ---------------------------------------------------------------------------
# Kernel 2: lidar->camera projection + normalization + visibility mask
# Lane-dense VPU-only kernel; one grid step per batch, static loop over cams,
# lidar2img read as scalars from SMEM, Q padded to a multiple of 128.
# ---------------------------------------------------------------------------
def _project_kernel(ref_ref, l2i_ref, grid_out_ref, mask_out_ref,
                    *, num_cam, pc_range, img_h, img_w, eps):
    # ref_ref:      [1, 3, Qp] f32 (VMEM), normalized reference points in [0,1]
    # l2i_ref:      [B*num_cam*16] f32 (SMEM), row-major 4x4 matrices
    # grid_out_ref: [1, num_cam, 2, Qp] f32
    # mask_out_ref: [1, num_cam, 1, Qp] f32
    b = pl.program_id(0)

    r = ref_ref[0]                                   # [3, Qp]
    px = r[0:1, :] * (pc_range[3] - pc_range[0]) + pc_range[0]   # [1, Qp]
    py = r[1:2, :] * (pc_range[4] - pc_range[1]) + pc_range[1]
    pz = r[2:3, :] * (pc_range[5] - pc_range[2]) + pc_range[2]

    for n in range(num_cam):                         # static, unrolled
        base = (b * num_cam + n) * 16

        def cam_row(i, base=base):
            # scalar-broadcast FMAs: (lidar2img @ [px, py, pz, 1])[i]
            return (l2i_ref[base + 4 * i + 0] * px +
                    l2i_ref[base + 4 * i + 1] * py +
                    l2i_ref[base + 4 * i + 2] * pz +
                    l2i_ref[base + 4 * i + 3])

        cx = cam_row(0)
        cy = cam_row(1)
        cz = cam_row(2)

        vis = cz > eps
        denom = jnp.maximum(cz, eps)
        x = cx / denom / img_w
        y = cy / denom / img_h
        x = (x - 0.5) * 2.0
        y = (y - 0.5) * 2.0
        valid = vis & (x > -1.0) & (x < 1.0) & (y > -1.0) & (y < 1.0)

        grid_out_ref[0, n] = jnp.concatenate([x, y], axis=0)     # [2, Qp]
        mask_out_ref[0, n] = valid.astype(jnp.float32)           # [1, Qp]


def project_reference_points(reference_points, lidar2img, pc_range, img_shape):
    """reference_points: [B, Q, 3], lidar2img: [B, num_cam, 4, 4]
    -> grids [B, num_cam, 2, Q] f32, mask [B, num_cam, 1, Q] f32 (0/1)."""
    B, Q, _ = reference_points.shape
    num_cam = lidar2img.shape[1]
    Qp = _round_up(Q, 128)                # lane-dense unmasked stores

    ref_t = jnp.transpose(reference_points.astype(jnp.float32), (0, 2, 1))  # [B,3,Q]
    if Qp != Q:
        ref_t = jnp.pad(ref_t, ((0, 0), (0, 0), (0, Qp - Q)))
    l2i_flat = lidar2img.astype(jnp.float32).reshape(B * num_cam * 16)

    kernel = functools.partial(
        _project_kernel,
        num_cam=num_cam,
        pc_range=tuple(float(v) for v in pc_range),
        img_h=float(img_shape[0]),
        img_w=float(img_shape[1]),
        eps=1e-5,
    )
    grids, mask = pl.pallas_call(
        kernel,
        out_shape=(
            jax.ShapeDtypeStruct((B, num_cam, 2, Qp), jnp.float32),
            jax.ShapeDtypeStruct((B, num_cam, 1, Qp), jnp.float32),
        ),
        grid_spec=pltpu.PrefetchScalarGridSpec(
            num_scalar_prefetch=0,
            grid=(B,),
            in_specs=[
                pl.BlockSpec((1, 3, Qp), lambda b: (b, 0, 0)),
                pl.BlockSpec(memory_space=pltpu.MemorySpace.SMEM),
            ],
            out_specs=[
                pl.BlockSpec((1, num_cam, 2, Qp), lambda b: (b, 0, 0, 0)),
                pl.BlockSpec((1, num_cam, 1, Qp), lambda b: (b, 0, 0, 0)),
            ],
        ),
        compiler_params=pltpu.CompilerParams(
            dimension_semantics=("parallel",)),
    )(ref_t, l2i_flat)
    return grids[..., :Q], mask[..., :Q]


# ---------------------------------------------------------------------------
# Module-level wrapper mirroring ImgFeatAggregator
# ---------------------------------------------------------------------------
class ImgFeatAggregator:
    def __init__(self, interp_method="bilinear"):
        assert interp_method in ["bilinear", "bicubic", "nearest"]
        # TODO(synk): only 'bilinear' is implemented in the Pallas kernel.
        self.inter_method = interp_method

    def interp_imgfeat(self, imgfeat, grid_px_py):
        # imgfeat: [N, C, Hin, Win], grid_px_py: [N, Hout, Wout, 2]
        return grid_sample_bilinear(imgfeat, grid_px_py)

    def feature_sampling(self, mlvl_feats, reference_points, pc_range,
                         lidar2img, img_shape):
        # TODO(synk): PyTorch takes img_metas dicts; here lidar2img/img_shape
        # are passed as arrays/tuple directly.
        B, num_query, _ = reference_points.shape
        num_cam = lidar2img.shape[1]
        reference_points_3d = reference_points

        grids, mask = project_reference_points(
            reference_points, lidar2img, pc_range, img_shape)

        mask_b = mask > 0.5                                       # [B, num_cam, 1, Q]
        mask_out = jnp.transpose(mask_b, (0, 2, 3, 1))[..., None, None]
        # -> [B, 1, Q, num_cam, 1, 1]  (matches the PyTorch permute)

        # lane-dense kernel output [B, num_cam, 2, Q] -> per-view [Q, 2] grid
        grid_bn = jnp.transpose(grids, (0, 1, 3, 2)).reshape(
            B * num_cam, num_query, 2)

        sampled_feats = []
        C = None
        for feat in mlvl_feats:
            _, N, C, H, W = feat.shape
            feat_bn = feat.reshape(B * N, C, H, W)
            s_qc = _grid_sample_qc(feat_bn, grid_bn)              # [B*N, Q, C]
            # small-slab layout plumbing only (B*N*Q*C elements per level)
            s = jnp.transpose(s_qc.reshape(B, N, num_query, C), (0, 3, 2, 1))
            sampled_feats.append(s[..., None])                    # [B, C, Q, N, 1]
        sampled = jnp.stack(sampled_feats, axis=-1)               # [B, C, Q, N, 1, L]
        sampled = sampled.reshape(B, C, num_query, num_cam, 1, len(mlvl_feats))
        sampled = sampled.astype(mlvl_feats[0].dtype)
        return reference_points_3d, sampled, mask_out

    def forward(self, input_img):
        # TODO(synk): PyTorch forward() depends on self.imgfeat_extractor
        # (ResNet/LoFTR), which is never defined in __init__; only the
        # batch*view flattening bookkeeping is reproduced here.
        if input_img.ndim == 4:
            return input_img
        b, v, c, h, w = input_img.shape
        flat = input_img.reshape(b * v, c, h, w)
        return flat.reshape(b, v, c, h, w)


# ---------------------------------------------------------------------------
# Pure-JAX references (sanity checks only)
# ---------------------------------------------------------------------------
def grid_sample_bilinear_ref(feat, grid):
    N, C, H, W = feat.shape
    _, Ho, Wo, _ = grid.shape
    x = grid[..., 0]
    y = grid[..., 1]
    ix = ((x + 1.0) * W - 1.0) * 0.5
    iy = ((y + 1.0) * H - 1.0) * 0.5
    ix0 = jnp.floor(ix)
    iy0 = jnp.floor(iy)
    wx1 = ix - ix0
    wy1 = iy - iy0
    featf = feat.reshape(N, C, H * W)

    def corner(iy_c, ix_c, w):
        valid = (ix_c >= 0) & (ix_c <= W - 1) & (iy_c >= 0) & (iy_c <= H - 1)
        flat = (jnp.clip(iy_c, 0, H - 1) * W +
                jnp.clip(ix_c, 0, W - 1)).astype(jnp.int32)       # [N, Ho, Wo]
        flat2 = flat.reshape(N, Ho * Wo)
        g = jax.vmap(lambda f, idx: jnp.take(f, idx, axis=1))(featf, flat2)
        g = g.reshape(N, C, Ho, Wo)
        return jnp.where(valid[:, None], g, 0.0) * w[:, None]

    return (corner(iy0, ix0, (1 - wy1) * (1 - wx1)) +
            corner(iy0, ix0 + 1, (1 - wy1) * wx1) +
            corner(iy0 + 1, ix0, wy1 * (1 - wx1)) +
            corner(iy0 + 1, ix0 + 1, wy1 * wx1))


def project_reference_points_ref(reference_points, lidar2img, pc_range,
                                 img_shape, eps=1e-5):
    px = reference_points[..., 0:1] * (pc_range[3] - pc_range[0]) + pc_range[0]
    py = reference_points[..., 1:2] * (pc_range[4] - pc_range[1]) + pc_range[1]
    pz = reference_points[..., 2:3] * (pc_range[5] - pc_range[2]) + pc_range[2]
    ref_h = jnp.concatenate([px, py, pz, jnp.ones_like(px)], axis=-1)   # [B,Q,4]
    l = lidar2img[:, :, None, :, :]                                     # [B,N,1,4,4]
    rh = ref_h[:, None, :, None, :]                                     # [B,1,Q,1,4]
    cam = jnp.sum(l * rh, axis=-1)                                      # [B,N,Q,4]
    z = cam[..., 2:3]
    vis = z > eps
    denom = jnp.maximum(z, eps)
    x = cam[..., 0:1] / denom / img_shape[1]
    y = cam[..., 1:2] / denom / img_shape[0]
    x = (x - 0.5) * 2.0
    y = (y - 0.5) * 2.0
    valid = vis & (x > -1.0) & (x < 1.0) & (y > -1.0) & (y < 1.0)
    grid = jnp.concatenate([x, y], axis=-1)                             # [B,N,Q,2]
    return grid, valid


def feature_sampling_ref(mlvl_feats, reference_points, pc_range, lidar2img,
                         img_shape):
    B, num_query, _ = reference_points.shape
    num_cam = lidar2img.shape[1]
    grid, valid = project_reference_points_ref(
        reference_points, lidar2img, pc_range, img_shape)
    mask6 = jnp.transpose(valid.reshape(B, num_cam, 1, num_query, 1, 1),
                          (0, 2, 3, 1, 4, 5))
    grid_bn = grid.reshape(B * num_cam, num_query, 1, 2)
    outs = []
    C = None
    for feat in mlvl_feats:
        _, N, C, H, W = feat.shape
        s = grid_sample_bilinear_ref(feat.reshape(B * N, C, H, W), grid_bn)
        s = jnp.transpose(s.reshape(B, N, C, num_query, 1), (0, 2, 3, 1, 4))
        outs.append(s)
    stacked = jnp.stack(outs, axis=-1).reshape(
        B, C, num_query, num_cam, 1, len(mlvl_feats))
    return stacked, mask6


if __name__ == "__main__":
    key = jax.random.PRNGKey(0)
    k1, k2, k3, k4, k5, k6 = jax.random.split(key, 6)

    agg = ImgFeatAggregator(interp_method="bilinear")

    # ---- interp_imgfeat (tiled grid_sample kernel) ----
    N, C, Hin, Win = 2, 4, 16, 16
    Hout, Wout = 8, 8
    imgfeat = jax.random.normal(k1, (N, C, Hin, Win), dtype=jnp.float32)
    grid = jax.random.uniform(k2, (N, Hout, Wout, 2),
                              minval=-1.1, maxval=1.1, dtype=jnp.float32)

    sampled = jax.block_until_ready(agg.interp_imgfeat(imgfeat, grid))
    ref = grid_sample_bilinear_ref(imgfeat, grid)
    assert sampled.shape == (N, C, Hout, Wout)
    # bf16 MXU operands -> compare against the f32 reference at a loose tol.
    assert jnp.allclose(sampled, ref, atol=5e-2, rtol=5e-2)

    # explicitly exercise the multi-tile (Q- and HW-tiled) accumulation path
    small = _grid_sample_qc(imgfeat, grid.reshape(N, Hout * Wout, 2),
                            q_tile_max=32, hw_tile_max=128)
    small = jax.block_until_ready(small)
    ref_qc = jnp.transpose(ref.reshape(N, C, Hout * Wout), (0, 2, 1))
    assert jnp.allclose(small, ref_qc, atol=5e-2, rtol=5e-2)

    # ---- feature_sampling (projection kernel + grid_sample kernel) ----
    B, num_cam, num_query = 2, 2, 16
    pc_range = [-51.2, -51.2, -5.0, 51.2, 51.2, 3.0]
    img_shape = (128.0, 128.0)  # (H, W)
    reference_points = jax.random.uniform(k3, (B, num_query, 3),
                                          dtype=jnp.float32)
    lidar2img = jax.random.normal(k4, (B, num_cam, 4, 4),
                                  dtype=jnp.float32) * 10.0
    mlvl_feats = [
        jax.random.normal(k5, (B, num_cam, C, 16, 16), dtype=jnp.float32),
        jax.random.normal(k6, (B, num_cam, C, 8, 8), dtype=jnp.float32),
    ]

    ref3d, feats, mask = agg.feature_sampling(
        mlvl_feats, reference_points, pc_range, lidar2img, img_shape)
    feats = jax.block_until_ready(feats)
    mask = jax.block_until_ready(mask)
    assert feats.shape == (B, C, num_query, num_cam, 1, len(mlvl_feats))
    assert mask.shape == (B, 1, num_query, num_cam, 1, 1)

    # projection kernel vs pure-JAX reference
    grids_k, mask_k = project_reference_points(
        reference_points, lidar2img, pc_range, img_shape)
    grids_k = jax.block_until_ready(grids_k)
    grid_r, valid_r = project_reference_points_ref(
        reference_points, lidar2img, pc_range, img_shape)
    grids_k_t = jnp.transpose(grids_k, (0, 1, 3, 2))          # [B, num_cam, Q, 2]
    assert jnp.array_equal(mask_k[:, :, 0, :] > 0.5, valid_r[..., 0])
    # compare projected coordinates where visible/in-range (well-conditioned)
    sel = valid_r[..., 0][..., None]
    close = jnp.abs(grids_k_t - grid_r) <= (1e-3 + 1e-3 * jnp.abs(grid_r))
    assert bool(jnp.all(jnp.where(sel, close, True)))

    # end-to-end sampled features vs pure-JAX reference (checked where visible)
    feats_ref, mask_ref6 = feature_sampling_ref(
        mlvl_feats, reference_points, pc_range, lidar2img, img_shape)
    assert jnp.array_equal(mask, mask_ref6)
    close_f = jnp.abs(feats - feats_ref) <= (5e-2 + 5e-2 * jnp.abs(feats_ref))
    assert bool(jnp.all(jnp.where(mask, close_f, True)))

    print("KERNEL_OK")
</pallas_src>

<mosaic_0001>
module attributes {stable_mosaic.version = 11 : i64} {
  func.func @_grid_sample_kernel(%arg0: i32, %arg1: i32, %arg2: i32, %arg3: memref<1x64x2xf32, #tpu.memory_space<vmem>>, %arg4: memref<1x256x4xbf16, #tpu.memory_space<vmem>>, %arg5: memref<1x64x4xf32, #tpu.memory_space<vmem>>) attributes {dimension_semantics = [#tpu.dimension_semantics<parallel>, #tpu.dimension_semantics<parallel>, #tpu.dimension_semantics<arbitrary>], iteration_bounds = array<i64: 2, 1, 1>, scalar_prefetch = 0 : i64, scratch_operands = 0 : i64, tpu.core_type = #tpu.core_type<tc>, window_params = [{transform_indices = @transform_0, window_bounds = array<i64: 1, 64, 2>}, {transform_indices = @transform_1, window_bounds = array<i64: 1, 256, 4>}, {transform_indices = @transform_2, window_bounds = array<i64: 1, 64, 4>}]} {
    %c0_i32 = arith.constant 0 : i32
    %0 = arith.cmpi eq, %arg2, %c0_i32 : i32
    %1 = arith.extui %0 : i1 to i32
    %c0_i32_0 = arith.constant 0 : i32
    %2 = arith.cmpi ne, %1, %c0_i32_0 : i32
    scf.if %2 {
      %cst_42 = arith.constant 0.000000e+00 : f32
      %118 = vector.broadcast %cst_42 : f32 to vector<1x64x4xf32>
      %c0_43 = arith.constant 0 : index
      %c0_44 = arith.constant 0 : index
      %c0_45 = arith.constant 0 : index
      %119 = vector.load %arg5[%c0_43, %c0_44, %c0_45] : memref<1x64x4xf32, #tpu.memory_space<vmem>>, vector<1x64x4xf32>
      tpu.vector_store %arg5[%c0_43, %c0_44, %c0_45], %118 {strides = array<i32>} : memref<1x64x4xf32, #tpu.memory_space<vmem>>, vector<1x64x4xf32>,
    } else {
    }
    %c0 = arith.constant 0 : index
    %c0_1 = arith.constant 0 : index
    %c0_2 = arith.constant 0 : index
    %3 = vector.load %arg3[%c0, %c0_1, %c0_2] : memref<1x64x2xf32, #tpu.memory_space<vmem>>, vector<1x64x2xf32>
    %4 = vector.shape_cast %3 : vector<1x64x2xf32> to vector<64x2xf32>
    %5 = vector.extract_strided_slice %4 {offsets = [0, 0], sizes = [64, 1], strides = [1, 1]} : vector<64x2xf32> to vector<64x1xf32>
    %6 = vector.extract_strided_slice %4 {offsets = [0, 1], sizes = [64, 1], strides = [1, 1]} : vector<64x2xf32> to vector<64x1xf32>
    %cst = arith.constant 1.000000e+00 : f32
    %7 = vector.broadcast %cst : f32 to vector<64x1xf32>
    %8 = arith.addf %5, %7 : vector<64x1xf32>
    %cst_3 = arith.constant 1.600000e+01 : f32
    %9 = vector.broadcast %cst_3 : f32 to vector<64x1xf32>
    %10 = arith.mulf %8, %9 : vector<64x1xf32>
    %cst_4 = arith.constant 1.000000e+00 : f32
    %11 = vector.broadcast %cst_4 : f32 to vector<64x1xf32>
    %12 = arith.subf %10, %11 : vector<64x1xf32>
    %cst_5 = arith.constant 5.000000e-01 : f32
    %13 = vector.broadcast %cst_5 : f32 to vector<64x1xf32>
    %14 = arith.mulf %12, %13 : vector<64x1xf32>
    %cst_6 = arith.constant 1.000000e+00 : f32
    %15 = vector.broadcast %cst_6 : f32 to vector<64x1xf32>
    %16 = arith.addf %6, %15 : vector<64x1xf32>
    %cst_7 = arith.constant 1.600000e+01 : f32
    %17 = vector.broadcast %cst_7 : f32 to vector<64x1xf32>
    %18 = arith.mulf %16, %17 : vector<64x1xf32>
    %cst_8 = arith.constant 1.000000e+00 : f32
    %19 = vector.broadcast %cst_8 : f32 to vector<64x1xf32>
    %20 = arith.subf %18, %19 : vector<64x1xf32>
    %cst_9 = arith.constant 5.000000e-01 : f32
    %21 = vector.broadcast %cst_9 : f32 to vector<64x1xf32>
    %22 = arith.mulf %20, %21 : vector<64x1xf32>
    %23 = math.floor %14 : vector<64x1xf32>
    %24 = math.floor %22 : vector<64x1xf32>
    %cst_10 = arith.constant 1.000000e+00 : f32
    %25 = vector.broadcast %cst_10 : f32 to vector<64x1xf32>
    %26 = arith.addf %23, %25 : vector<64x1xf32>
    %cst_11 = arith.constant 1.000000e+00 : f32
    %27 = vector.broadcast %cst_11 : f32 to vector<64x1xf32>
    %28 = arith.addf %24, %27 : vector<64x1xf32>
    %29 = arith.subf %14, %23 : vector<64x1xf32>
    %cst_12 = arith.constant 1.000000e+00 : f32
    %30 = vector.broadcast %cst_12 : f32 to vector<64x1xf32>
    %31 = arith.subf %30, %29 : vector<64x1xf32>
    %32 = arith.subf %22, %24 : vector<64x1xf32>
    %cst_13 = arith.constant 1.000000e+00 : f32
    %33 = vector.broadcast %cst_13 : f32 to vector<64x1xf32>
    %34 = arith.subf %33, %32 : vector<64x1xf32>
    %cst_14 = arith.constant 0.000000e+00 : f32
    %35 = vector.broadcast %cst_14 : f32 to vector<64x1xf32>
    %36 = arith.cmpf oge, %23, %35 : vector<64x1xf32>
    %cst_15 = arith.constant 1.500000e+01 : f32
    %37 = vector.broadcast %cst_15 : f32 to vector<64x1xf32>
    %38 = arith.cmpf ole, %23, %37 : vector<64x1xf32>
    %39 = arith.andi %36, %38 : vector<64x1xi1>
    %cst_16 = arith.constant 0.000000e+00 : f32
    %40 = vector.broadcast %cst_16 : f32 to vector<64x1xf32>
    %41 = arith.cmpf oge, %26, %40 : vector<64x1xf32>
    %cst_17 = arith.constant 1.500000e+01 : f32
    %42 = vector.broadcast %cst_17 : f32 to vector<64x1xf32>
    %43 = arith.cmpf ole, %26, %42 : vector<64x1xf32>
    %44 = arith.andi %41, %43 : vector<64x1xi1>
    %cst_18 = arith.constant 0.000000e+00 : f32
    %45 = vector.broadcast %cst_18 : f32 to vector<64x1xf32>
    %46 = arith.cmpf oge, %24, %45 : vector<64x1xf32>
    %cst_19 = arith.constant 1.500000e+01 : f32
    %47 = vector.broadcast %cst_19 : f32 to vector<64x1xf32>
    %48 = arith.cmpf ole, %24, %47 : vector<64x1xf32>
    %49 = arith.andi %46, %48 : vector<64x1xi1>
    %cst_20 = arith.constant 0.000000e+00 : f32
    %50 = vector.broadcast %cst_20 : f32 to vector<64x1xf32>
    %51 = arith.cmpf oge, %28, %50 : vector<64x1xf32>
    %cst_21 = arith.constant 1.500000e+01 : f32
    %52 = vector.broadcast %cst_21 : f32 to vector<64x1xf32>
    %53 = arith.cmpf ole, %28, %52 : vector<64x1xf32>
    %54 = arith.andi %51, %53 : vector<64x1xi1>
    %55 = arith.andi %49, %39 : vector<64x1xi1>
    %56 = arith.mulf %34, %31 : vector<64x1xf32>
    %cst_22 = arith.constant 0.000000e+00 : f32
    %57 = vector.broadcast %cst_22 : f32 to vector<64x1xf32>
    %58 = arith.select %55, %56, %57 : vector<64x1xi1>, vector<64x1xf32>
    %59 = arith.andi %49, %44 : vector<64x1xi1>
    %60 = arith.mulf %34, %29 : vector<64x1xf32>
    %cst_23 = arith.constant 0.000000e+00 : f32
    %61 = vector.broadcast %cst_23 : f32 to vector<64x1xf32>
    %62 = arith.select %59, %60, %61 : vector<64x1xi1>, vector<64x1xf32>
    %63 = arith.andi %54, %39 : vector<64x1xi1>
    %64 = arith.mulf %32, %31 : vector<64x1xf32>
    %cst_24 = arith.constant 0.000000e+00 : f32
    %65 = vector.broadcast %cst_24 : f32 to vector<64x1xf32>
    %66 = arith.select %63, %64, %65 : vector<64x1xi1>, vector<64x1xf32>
    %67 = arith.andi %54, %44 : vector<64x1xi1>
    %68 = arith.mulf %32, %29 : vector<64x1xf32>
    %cst_25 = arith.constant 0.000000e+00 : f32
    %69 = vector.broadcast %cst_25 : f32 to vector<64x1xf32>
    %70 = arith.select %67, %68, %69 : vector<64x1xi1>, vector<64x1xf32>
    %cst_26 = arith.constant 1.600000e+01 : f32
    %71 = vector.broadcast %cst_26 : f32 to vector<64x1xf32>
    %72 = arith.mulf %24, %71 : vector<64x1xf32>
    %73 = arith.addf %72, %23 : vector<64x1xf32>
    %74 = arith.fptosi %73 : vector<64x1xf32> to vector<64x1xi32>
    %c256_i32 = arith.constant 256 : i32
    %75 = arith.muli %arg2, %c256_i32 : i32
    %76 = vector.broadcast %75 : i32 to vector<64x1xi32>
    %77 = arith.subi %74, %76 : vector<64x1xi32>
    %78 = tpu.iota {dimensions = array<i32: 1>} : vector<64x256xi32>
    %79 = vector.broadcast %77 : vector<64x1xi32> to vector<64x256xi32>
    %80 = arith.subi %78, %79 : vector<64x256xi32>
    %c0_i32_27 = arith.constant 0 : i32
    %81 = vector.broadcast %c0_i32_27 : i32 to vector<64x256xi32>
    %82 = arith.cmpi eq, %80, %81 : vector<64x256xi32>
    %cst_28 = arith.constant 0.000000e+00 : f32
    %83 = vector.shape_cast %58 : vector<64x1xf32> to vector<64x1xf32>
    %84 = vector.broadcast %83 : vector<64x1xf32> to vector<64x256xf32>
    %85 = vector.broadcast %cst_28 : f32 to vector<64x256xf32>
    %86 = arith.select %82, %84, %85 : vector<64x256xi1>, vector<64x256xf32>
    %c1_i32 = arith.constant 1 : i32
    %87 = vector.broadcast %c1_i32 : i32 to vector<64x256xi32>
    %88 = arith.cmpi eq, %80, %87 : vector<64x256xi32>
    %cst_29 = arith.constant 0.000000e+00 : f32
    %89 = vector.shape_cast %62 : vector<64x1xf32> to vector<64x1xf32>
    %90 = vector.broadcast %89 : vector<64x1xf32> to vector<64x256xf32>
    %91 = vector.broadcast %cst_29 : f32 to vector<64x256xf32>
    %92 = arith.select %88, %90, %91 : vector<64x256xi1>, vector<64x256xf32>
    %93 = arith.addf %86, %92 : vector<64x256xf32>
    %c16_i32 = arith.constant 16 : i32
    %94 = vector.broadcast %c16_i32 : i32 to vector<64x256xi32>
    %95 = arith.cmpi eq, %80, %94 : vector<64x256xi32>
    %cst_30 = arith.constant 0.000000e+00 : f32
    %96 = vector.shape_cast %66 : vector<64x1xf32> to vector<64x1xf32>
    %97 = vector.broadcast %96 : vector<64x1xf32> to vector<64x256xf32>
    %98 = vector.broadcast %cst_30 : f32 to vector<64x256xf32>
    %99 = arith.select %95, %97, %98 : vector<64x256xi1>, vector<64x256xf32>
    %100 = arith.addf %93, %99 : vector<64x256xf32>
    %c17_i32 = arith.constant 17 : i32
    %101 = vector.broadcast %c17_i32 : i32 to vector<64x256xi32>
    %102 = arith.cmpi eq, %80, %101 : vector<64x256xi32>
    %cst_31 = arith.constant 0.000000e+00 : f32
    %103 = vector.shape_cast %70 : vector<64x1xf32> to vector<64x1xf32>
    %104 = vector.broadcast %103 : vector<64x1xf32> to vector<64x256xf32>
    %105 = vector.broadcast %cst_31 : f32 to vector<64x256xf32>
    %106 = arith.select %102, %104, %105 : vector<64x256xi1>, vector<64x256xf32>
    %107 = arith.addf %100, %106 : vector<64x256xf32>
    %c0_32 = arith.constant 0 : index
    %c0_33 = arith.constant 0 : index
    %c0_34 = arith.constant 0 : index
    %108 = vector.load %arg5[%c0_32, %c0_33, %c0_34] : memref<1x64x4xf32, #tpu.memory_space<vmem>>, vector<1x64x4xf32>
    %109 = vector.shape_cast %108 : vector<1x64x4xf32> to vector<64x4xf32>
    %110 = arith.truncf %107 : vector<64x256xf32> to vector<64x256xbf16>
    %c0_35 = arith.constant 0 : index
    %c0_36 = arith.constant 0 : index
    %c0_37 = arith.constant 0 : index
    %111 = vector.load %arg4[%c0_35, %c0_36, %c0_37] : memref<1x256x4xbf16, #tpu.memory_space<vmem>>, vector<1x256x4xbf16>
    %112 = vector.shape_cast %111 : vector<1x256x4xbf16> to vector<256x4xbf16>
    %cst_38 = arith.constant dense<0.000000e+00> : vector<64x4xf32>
    %113 = tpu.matmul %110, %112, %cst_38 {dimension_numbers = #tpu.dot_dimension_numbers<[1], [0], [0], [1], [0, 0, 1, 1], [], []>} : vector<64x256xbf16>, vector<256x4xbf16>, vector<64x4xf32> -> vector<64x4xf32>
    %114 = arith.addf %109, %113 : vector<64x4xf32>
    %c0_39 = arith.constant 0 : index
    %c0_40 = arith.constant 0 : index
    %c0_41 = arith.constant 0 : index
    %115 = vector.load %arg5[%c0_39, %c0_40, %c0_41] : memref<1x64x4xf32, #tpu.memory_space<vmem>>, vector<1x64x4xf32>
    %116 = vector.shape_cast %115 : vector<1x64x4xf32> to vector<64x4xf32>
    %117 = vector.shape_cast %114 : vector<64x4xf32> to vector<1x64x4xf32>
    tpu.vector_store %arg5[%c0_39, %c0_40, %c0_41], %117 {strides = array<i32>} : memref<1x64x4xf32, #tpu.memory_space<vmem>>, vector<1x64x4xf32>,
    return
  }
  func.func @transform_0(%arg0: i32, %arg1: i32, %arg2: i32) -> (i32, i32, i32) {
    %c0_i32 = arith.constant 0 : i32
    %c0_i32_0 = arith.constant 0 : i32
    return %arg0, %arg1, %c0_i32 : i32, i32, i32
  }
  func.func @transform_1(%arg0: i32, %arg1: i32, %arg2: i32) -> (i32, i32, i32) {
    %c0_i32 = arith.constant 0 : i32
    %c0_i32_0 = arith.constant 0 : i32
    return %arg0, %arg2, %c0_i32 : i32, i32, i32
  }
  func.func @transform_2(%arg0: i32, %arg1: i32, %arg2: i32) -> (i32, i32, i32) {
    %c0_i32 = arith.constant 0 : i32
    %c0_i32_0 = arith.constant 0 : i32
    return %arg0, %arg1, %c0_i32 : i32, i32, i32
  }
}

</mosaic_0001>

<llo_original>
// kernel: tpu_custom_call.1
$region0: #{tpu_custom_call.1}
  #allocation0 [shape = 'u32[]', space=smem, size = 0x4, offset = 0x4, fixed_abs, tag = 'smem constant byte address 0x4 - core index']
  #allocation1 [shape = 'u32[144,128]{1,0:T(1,128)}', space=vmem, size = 0x12000, scoped, tag = 'internal scratch']
  %s0 = inlined_call_operand.vmem [shape: f32[2,64,2], index: 0, kind: input, shape index: {}]
  %s1 = inlined_call_operand.vmem [shape: bf16[2,256,4], index: 1, kind: input, shape index: {}]
  %s2 = inlined_call_operand.vmem [shape: f32[2,64,4], index: 2, kind: output, shape index: {}]
  %s3 = sld [smem:[#allocation0]]
  $region45: #{tpu_custom_call.1} parent=0
    _
  %s5 = ssub.s32 1, %s3
  %s6 = scalar_select 0, %s5, %s3
  loop: start=0, step=1, limit=4
  $region2: #{tpu_custom_call.1} parent=0 // loop_pre_header
    _
  $region3: #{tpu_custom_call.1} parent=0 // loop_header
    %s8 = sphi 0, %s12
    %p9 = scmp.ge.s32.totalorder %s8, 4
    %s15 = sphi 0, %s34
    %s16 = sphi 0, %s30
    %s17 = sphi 0, %s26
    %s18 = sphi 0, %s15
    %s19 = sphi 0, %s16
    %s20 = sphi 0, %s17
    %s21 = sphi 0, %s18
    %s22 = sphi 0, %s19
    %s23 = sphi 0, %s20
    %s39 = sphi 0, %s41
    %s42 = sphi 0, %s39
    %s43 = sphi 0, %s42
    %s59 = sphi 0, %s43
    %s67 = sphi 0, %s69
    %s70 = sphi 0, %s67
    %s71 = sphi 0, %s70
    %s87 = sphi 0, %s71
    %s95 = sphi 0, %s97
    %s98 = sphi 0, %s95
    %s99 = sphi 0, %s98
    %s115 = sphi 0, %s99
  $region4: #{tpu_custom_call.1} parent=0 // loop_header_branch
    %11 = sbr.rel (%p9) target = $region8
  $region5: #{tpu_custom_call.1} parent=0 // loop_body
    %s13 = ssub.s32 %s8, 1
    %s14 = ssub.s32 %s8, 2
    %s24 = sadd.s32 1, %s17
    %p25 = scmp.ge.s32.totalorder %s24, 1
    %s26 = scalar_select %p25, 0, %s24
    %s27 = sadd.s32 1, %s16
    %s28 = scalar_select %p25, %s27, %s16
    %p29 = scmp.ge.s32.totalorder %s28, 1
    %s30 = scalar_select %p29, 0, %s28
    %s31 = sadd.s32 1, %s15
    %s32 = scalar_select %p29, %s31, %s15
    %p33 = scmp.ge.s32.totalorder %s32, 2
    %s34 = scalar_select %p33, 0, %s32
    %s35 = ssub.s32 %s15, %s34
    %s36 = ssub.s32 %s16, %s30
    %s37 = sor.u32 %s35, %s36
    %p38 = scmp.eq.s32.totalorder %s37, 0
    %s40 = sadd.s32 %s39, 1
    %s41 = scalar_select %p38, %s39, %s40
    %p44 = pneg %p38
    %p45 = scmp.eq.s32.totalorder %s8, 1
    %p46 = por %p44, %p45
    %p47 = scmp.ne.s32.totalorder %s39, %s42
    %p48 = scmp.eq.s32.totalorder %s8, 0
    %p49 = por %p47, %p48
    %p50 = scmp.ne.s32.totalorder %s39, %s42
    %p51 = scmp.eq.s32.totalorder %s13, 1
    %p52 = por %p50, %p51
    %p53 = scmp.ne.s32.totalorder %s42, %s43
    %p54 = scmp.eq.s32.totalorder %s13, 0
    %p55 = por %p53, %p54
    %p56 = scmp.ne.s32.totalorder %s42, %s43
    %p57 = scmp.eq.s32.totalorder %s14, 1
    %p58 = por %p56, %p57
    %p60 = scmp.ne.s32.totalorder %s43, %s59
    %p61 = scmp.eq.s32.totalorder %s14, 0
    %p62 = por %p60, %p61
    %s63 = ssub.s32 %s15, %s34
    %s64 = ssub.s32 %s17, %s26
    %s65 = sor.u32 %s63, %s64
    %p66 = scmp.eq.s32.totalorder %s65, 0
    %s68 = sadd.s32 %s67, 1
    %s69 = scalar_select %p66, %s67, %s68
    %p72 = pneg %p66
    %p73 = scmp.eq.s32.totalorder %s8, 1
    %p74 = por %p72, %p73
    %p75 = scmp.ne.s32.totalorder %s67, %s70
    %p76 = scmp.eq.s32.totalorder %s8, 0
    %p77 = por %p75, %p76
    %p78 = scmp.ne.s32.totalorder %s67, %s70
    %p79 = scmp.eq.s32.totalorder %s13, 1
    %p80 = por %p78, %p79
    %p81 = scmp.ne.s32.totalorder %s70, %s71
    %p82 = scmp.eq.s32.totalorder %s13, 0
    %p83 = por %p81, %p82
    %p84 = scmp.ne.s32.totalorder %s70, %s71
    %p85 = scmp.eq.s32.totalorder %s14, 1
    %p86 = por %p84, %p85
    %p88 = scmp.ne.s32.totalorder %s71, %s87
    %p89 = scmp.eq.s32.totalorder %s14, 0
    %p90 = por %p88, %p89
    %s91 = ssub.s32 %s15, %s34
    %s92 = ssub.s32 %s16, %s30
    %s93 = sor.u32 %s91, %s92
    %p94 = scmp.eq.s32.totalorder %s93, 0
    %s96 = sadd.s32 %s95, 1
    %s97 = scalar_select %p94, %s95, %s96
    %p100 = pneg %p94
    %p101 = scmp.eq.s32.totalorder %s8, 1
    %p102 = por %p100, %p101
    %p103 = scmp.ne.s32.totalorder %s95, %s98
    %p104 = scmp.eq.s32.totalorder %s8, 0
    %p105 = por %p103, %p104
    %p106 = scmp.ne.s32.totalorder %s95, %s98
    %p107 = scmp.eq.s32.totalorder %s13, 1
    %p108 = por %p106, %p107
    %p109 = scmp.ne.s32.totalorder %s98, %s99
    %p110 = scmp.eq.s32.totalorder %s13, 0
    %p111 = por %p109, %p110
    %p112 = scmp.ne.s32.totalorder %s98, %s99
    %p113 = scmp.eq.s32.totalorder %s14, 1
    %p114 = por %p112, %p113
    %p116 = scmp.ne.s32.totalorder %s99, %s115
    %p117 = scmp.eq.s32.totalorder %s14, 0
    %p118 = por %p116, %p117
    %p119 = scmp.le.s32.totalorder 1, %s8
    %p120 = scmp.lt.s32.totalorder %s8, 3
    %p121 = pnand %p119, %p120
    %p122 = pneg %p121
    // Predicated region
    $region9: #{tpu_custom_call.1} parent=5 // pred_check
      _
    $region10: #{tpu_custom_call.1} parent=5 // pred_check_branch
      %124 = sbr.rel (%p121) target = $region12
    $region11: #{tpu_custom_call.1} parent=5 // pred_region
      %s125 = ssub.s32 %s8, 1
    $region12: #{tpu_custom_call.1} parent=5 // pred_fallthru
      _
    %p126 = scmp.lt.s32.totalorder %s8, 2
    // Predicated region
    $region13: #{tpu_custom_call.1} parent=5 // pred_check
      %p127 = pneg %p126
    $region14: #{tpu_custom_call.1} parent=5 // pred_check_branch
      %129 = sbr.rel (%p127) target = $region16
    $region15: #{tpu_custom_call.1} parent=5 // pred_region
      // Predicated region
      $region17: #{tpu_custom_call.1} parent=15 // pred_check
        %p130 = pneg %p49
      $region18: #{tpu_custom_call.1} parent=15 // pred_check_branch
        %132 = sbr.rel (%p130) target = $region20
      $region19: #{tpu_custom_call.1} parent=15 // pred_region
        %s133 = smul.u32 8, %s16
        %p134 = scmp.lt.s32.totalorder %s15, 1
        %s135 = scalar_select %p134, %s15, 1
        %p136 = scmp.lt.s32.totalorder %s133, 7
        %s137 = scalar_select %p136, %s133, 7
        %s138 = smul.addr %s135, 8
        %s139 = sadd.s32 %s137, %s138
        %s140 = smul.addr %s139, 8
        %s141 = scalar_lea.vmem %s0, %s140
        %s142 = smul.u32 8, %s16
      $region20: #{tpu_custom_call.1} parent=15 // pred_fallthru
        _
      // Predicated region
      $region21: #{tpu_custom_call.1} parent=15 // pred_check
        %p143 = pneg %p77
      $region22: #{tpu_custom_call.1} parent=15 // pred_check_branch
        %145 = sbr.rel (%p143) target = $region24
      $region23: #{tpu_custom_call.1} parent=15 // pred_region
        %s146 = smul.u32 32, %s17
        %p147 = scmp.lt.s32.totalorder %s15, 1
        %s148 = scalar_select %p147, %s15, 1
        %p149 = scmp.lt.s32.totalorder %s146, 31
        %s150 = scalar_select %p149, %s146, 31
        %s151 = smul.addr %s148, 32
        %s152 = sadd.s32 %s150, %s151
        %s153 = smul.addr %s152, 4
        %s154 = scalar_lea.vmem %s1, %s153
        %s155 = smul.u32 32, %s17
      $region24: #{tpu_custom_call.1} parent=15 // pred_fallthru
        _
    $region16: #{tpu_custom_call.1} parent=5 // pred_fallthru
      _
    %p156 = scmp.le.s32.totalorder 1, %s8
    %p157 = scmp.lt.s32.totalorder %s8, 3
    %p158 = pnand %p156, %p157
    %p159 = pneg %p158
    // Predicated region
    $region25: #{tpu_custom_call.1} parent=5 // pred_check
      _
    $region26: #{tpu_custom_call.1} parent=5 // pred_check_branch
      %161 = sbr.rel (%p158) target = $region28
    $region27: #{tpu_custom_call.1} parent=5 // pred_region
      %s162 = ssub.s32 %s8, 1
      %s163 = smul.u32 8, %s19
      %p164 = scmp.lt.s32.totalorder %s18, 1
      %s165 = scalar_select %p164, %s18, 1
      %p166 = scmp.lt.s32.totalorder %s163, 7
      %s167 = scalar_select %p166, %s163, 7
      %s168 = smul.addr %s165, 8
      %s169 = sadd.s32 %s167, %s168
      %s170 = smul.addr %s169, 8
      %s171 = scalar_lea.vmem %s0, %s170
      %p172 = pneg %p55
      %p173 = pneg %p52
      %s174 = smul.u32 32, %s20
      %p175 = scmp.lt.s32.totalorder %s18, 1
      %s176 = scalar_select %p175, %s18, 1
      %p177 = scmp.lt.s32.totalorder %s174, 31
      %s178 = scalar_select %p177, %s174, 31
      %s179 = smul.addr %s176, 32
      %s180 = sadd.s32 %s178, %s179
      %s181 = smul.addr %s180, 4
      %s182 = scalar_lea.vmem %s1, %s181
      %p183 = pneg %p83
      %p184 = pneg %p80
      %p185 = pneg %p111
      %p186 = pneg %p108
      %s187 = smul.u32 8, %s19
      %p188 = scmp.lt.s32.totalorder %s18, 1
      %s189 = scalar_select %p188, %s18, 1
      %p190 = scmp.lt.s32.totalorder %s187, 7
      %s191 = scalar_select %p190, %s187, 7
      %s192 = smul.addr %s189, 8
      %s193 = sadd.s32 %s191, %s192
      %s194 = smul.addr %s193, 8
      %s195 = scalar_lea.vmem %s2, %s194
      %s196 = smul.u32 8, %s19
      %p197 = scmp.lt.s32.totalorder %s18, 1
      %s198 = scalar_select %p197, %s18, 1
      %p199 = scmp.lt.s32.totalorder %s196, 7
      %s200 = scalar_select %p199, %s196, 7
      %s201 = smul.addr %s198, 8
      %s202 = sadd.s32 %s200, %s201
      %s203 = smul.addr %s202, 8
      %s204 = scalar_lea.vmem %s0, %s203
      %s205 = smul.u32 8, %s19
      %s206 = smul.u32 32, %s20
      %p207 = scmp.lt.s32.totalorder %s18, 1
      %s208 = scalar_select %p207, %s18, 1
      %p209 = scmp.lt.s32.totalorder %s206, 31
      %s210 = scalar_select %p209, %s206, 31
      %s211 = smul.addr %s208, 32
      %s212 = sadd.s32 %s210, %s211
      %s213 = smul.addr %s212, 4
      %s214 = scalar_lea.vmem %s1, %s213
      %s215 = smul.u32 32, %s20
      %s216 = smul.u32 8, %s19
      %p217 = scmp.lt.s32.totalorder %s18, 1
      %s218 = scalar_select %p217, %s18, 1
      %p219 = scmp.lt.s32.totalorder %s216, 7
      %s220 = scalar_select %p219, %s216, 7
      %s221 = smul.addr %s218, 8
      %s222 = sadd.s32 %s220, %s221
      %s223 = smul.addr %s222, 8
      %s224 = scalar_lea.vmem %s2, %s223
      %s225 = smul.u32 8, %s19
      %p227 = scmp.eq.s32.totalorder %s20, 0
      // Predicated region
      $region29: #{tpu_custom_call.1} parent=27 // pred_check
        %p228 = pneg %p227
      $region30: #{tpu_custom_call.1} parent=27 // pred_check_branch
        %230 = sbr.rel (%p228) target = $region32
      $region31: #{tpu_custom_call.1} parent=27 // pred_region
        %vm231 = vcmask 31744
        %232 = vst.msk [vmem:[%s224] sm:$0xff] %vm231, 0.0
        %233 = vst.msk [vmem:[%s224 + $0x8] sm:$0xff] %vm231, 0.0
        %234 = vst.msk [vmem:[%s224 + $0x10] sm:$0xff] %vm231, 0.0
        %235 = vst.msk [vmem:[%s224 + $0x18] sm:$0xff] %vm231, 0.0
        %236 = vst.msk [vmem:[%s224 + $0x20] sm:$0xff] %vm231, 0.0
        %237 = vst.msk [vmem:[%s224 + $0x28] sm:$0xff] %vm231, 0.0
        %238 = vst.msk [vmem:[%s224 + $0x30] sm:$0xff] %vm231, 0.0
        %239 = vst.msk [vmem:[%s224 + $0x38] sm:$0xff] %vm231, 0.0
      $region32: #{tpu_custom_call.1} parent=27 // pred_fallthru
        _
      %v240 = vld [vmem:[%s204] sm:$0xff]
      %v241 = vld [vmem:[%s204 + $0x8] sm:$0xff]
      %v242 = vld [vmem:[%s204 + $0x10] sm:$0xff]
      %v243 = vld [vmem:[%s204 + $0x18] sm:$0xff]
      %v244 = vld [vmem:[%s204 + $0x20] sm:$0xff]
      %v245 = vld [vmem:[%s204 + $0x28] sm:$0xff]
      %v246 = vld [vmem:[%s204 + $0x30] sm:$0xff]
      %v247 = vld [vmem:[%s204 + $0x38] sm:$0xff]
      %v248 = vadd.f32 %v240, 1.0
      %v249 = vadd.f32 %v241, 1.0
      %v250 = vadd.f32 %v242, 1.0
      %v251 = vadd.f32 %v243, 1.0
      %v252 = vadd.f32 %v244, 1.0
      %v253 = vadd.f32 %v245, 1.0
      %v254 = vadd.f32 %v246, 1.0
      %v255 = vadd.f32 %v247, 1.0
      %v256 = vmul.f32 %v248, 16.0
      %v257 = vmul.f32 %v249, 16.0
      %v258 = vmul.f32 %v250, 16.0
      %v259 = vmul.f32 %v251, 16.0
      %v260 = vmul.f32 %v252, 16.0
      %v261 = vmul.f32 %v253, 16.0
      %v262 = vmul.f32 %v254, 16.0
      %v263 = vmul.f32 %v255, 16.0
      %v264 = vsub.f32 %v256, 1.0
      %v265 = vsub.f32 %v257, 1.0
      %v266 = vsub.f32 %v258, 1.0
      %v267 = vsub.f32 %v259, 1.0
      %v268 = vsub.f32 %v260, 1.0
      %v269 = vsub.f32 %v261, 1.0
      %v270 = vsub.f32 %v262, 1.0
      %v271 = vsub.f32 %v263, 1.0
      %v272 = vmul.f32 %v264, 0.5
      %v273 = vmul.f32 %v265, 0.5
      %v274 = vmul.f32 %v266, 0.5
      %v275 = vmul.f32 %v267, 0.5
      %v276 = vmul.f32 %v268, 0.5
      %v277 = vmul.f32 %v269, 0.5
      %v278 = vmul.f32 %v270, 0.5
      %v279 = vmul.f32 %v271, 0.5
      %v280 = vfloor.f32 %v272
      %v281 = vfloor.f32 %v273
      %v282 = vfloor.f32 %v274
      %v283 = vfloor.f32 %v275
      %v284 = vfloor.f32 %v276
      %v285 = vfloor.f32 %v277
      %v286 = vfloor.f32 %v278
      %v287 = vfloor.f32 %v279
      %v288 = vadd.f32 %v280, 1.0
      %v289 = vadd.f32 %v281, 1.0
      %v290 = vadd.f32 %v282, 1.0
      %v291 = vadd.f32 %v283, 1.0
      %v292 = vadd.f32 %v284, 1.0
      %v293 = vadd.f32 %v285, 1.0
      %v294 = vadd.f32 %v286, 1.0
      %v295 = vadd.f32 %v287, 1.0
      %v296 = vsub.f32 %v272, %v280
      %v297 = vsub.f32 %v273, %v281
      %v298 = vsub.f32 %v274, %v282
      %v299 = vsub.f32 %v275, %v283
      %v300 = vsub.f32 %v276, %v284
      %v301 = vsub.f32 %v277, %v285
      %v302 = vsub.f32 %v278, %v286
      %v303 = vsub.f32 %v279, %v287
      %v304 = vsub.f32 1.0, %v296
      %v305 = vsub.f32 1.0, %v297
      %v306 = vsub.f32 1.0, %v298
      %v307 = vsub.f32 1.0, %v299
      %v308 = vsub.f32 1.0, %v300
      %v309 = vsub.f32 1.0, %v301
      %v310 = vsub.f32 1.0, %v302
      %v311 = vsub.f32 1.0, %v303
      %vm312 = vcmp.ge.f32.partialorder %v280, 0.0
      %vm313 = vcmp.ge.f32.partialorder %v281, 0.0
      %vm314 = vcmp.ge.f32.partialorder %v282, 0.0
      %vm315 = vcmp.ge.f32.partialorder %v283, 0.0
      %vm316 = vcmp.ge.f32.partialorder %v284, 0.0
      %vm317 = vcmp.ge.f32.partialorder %v285, 0.0
      %vm318 = vcmp.ge.f32.partialorder %v286, 0.0
      %vm319 = vcmp.ge.f32.partialorder %v287, 0.0
      %vm320 = vcmp.le.f32.partialorder %v280, 15.0
      %vm321 = vcmp.le.f32.partialorder %v281, 15.0
      %vm322 = vcmp.le.f32.partialorder %v282, 15.0
      %vm323 = vcmp.le.f32.partialorder %v283, 15.0
      %vm324 = vcmp.le.f32.partialorder %v284, 15.0
      %vm325 = vcmp.le.f32.partialorder %v285, 15.0
      %vm326 = vcmp.le.f32.partialorder %v286, 15.0
      %vm327 = vcmp.le.f32.partialorder %v287, 15.0
      %vm328 = vmand %vm312, %vm320
      %vm329 = vmand %vm313, %vm321
      %vm330 = vmand %vm314, %vm322
      %vm331 = vmand %vm315, %vm323
      %vm332 = vmand %vm316, %vm324
      %vm333 = vmand %vm317, %vm325
      %vm334 = vmand %vm318, %vm326
      %vm335 = vmand %vm319, %vm327
      %vm336 = vcmp.ge.f32.partialorder %v288, 0.0
      %vm337 = vcmp.ge.f32.partialorder %v289, 0.0
      %vm338 = vcmp.ge.f32.partialorder %v290, 0.0
      %vm339 = vcmp.ge.f32.partialorder %v291, 0.0
      %vm340 = vcmp.ge.f32.partialorder %v292, 0.0
      %vm341 = vcmp.ge.f32.partialorder %v293, 0.0
      %vm342 = vcmp.ge.f32.partialorder %v294, 0.0
      %vm343 = vcmp.ge.f32.partialorder %v295, 0.0
      %vm344 = vcmp.le.f32.partialorder %v288, 15.0
      %vm345 = vcmp.le.f32.partialorder %v289, 15.0
      %vm346 = vcmp.le.f32.partialorder %v290, 15.0
      %vm347 = vcmp.le.f32.partialorder %v291, 15.0
      %vm348 = vcmp.le.f32.partialorder %v292, 15.0
      %vm349 = vcmp.le.f32.partialorder %v293, 15.0
      %vm350 = vcmp.le.f32.partialorder %v294, 15.0
      %vm351 = vcmp.le.f32.partialorder %v295, 15.0
      %vm352 = vmand %vm336, %vm344
      %vm353 = vmand %vm337, %vm345
      %vm354 = vmand %vm338, %vm346
      %vm355 = vmand %vm339, %vm347
      %vm356 = vmand %vm340, %vm348
      %vm357 = vmand %vm341, %vm349
      %vm358 = vmand %vm342, %vm350
      %vm359 = vmand %vm343, %vm351
      %v360 = vsel %vm328, 1, 0
      %v361 = vsel %vm329, 1, 0
      %v362 = vsel %vm330, 1, 0
      %v363 = vsel %vm331, 1, 0
      %v364 = vsel %vm332, 1, 0
      %v365 = vsel %vm333, 1, 0
      %v366 = vsel %vm334, 1, 0
      %v367 = vsel %vm335, 1, 0
      %368 = vrot.lane.b32.xlu0 %v360, 1
      %v369 = vpop.permute.xlu0 %368
      %370 = vrot.lane.b32.xlu0 %v361, 1
      %v371 = vpop.permute.xlu0 %370
      %372 = vrot.lane.b32.xlu0 %v362, 1
      %v373 = vpop.permute.xlu0 %372
      %374 = vrot.lane.b32.xlu0 %v363, 1
      %v375 = vpop.permute.xlu0 %374
      %376 = vrot.lane.b32.xlu0 %v364, 1
      %v377 = vpop.permute.xlu0 %376
      %378 = vrot.lane.b32.xlu0 %v365, 1
      %v379 = vpop.permute.xlu0 %378
      %380 = vrot.lane.b32.xlu0 %v366, 1
      %v381 = vpop.permute.xlu0 %380
      %382 = vrot.lane.b32.xlu0 %v367, 1
      %v383 = vpop.permute.xlu0 %382
      %vm384 = vcmp.ne.s32.totalorder %v369, 0
      %vm385 = vcmp.ne.s32.totalorder %v371, 0
      %vm386 = vcmp.ne.s32.totalorder %v373, 0
      %vm387 = vcmp.ne.s32.totalorder %v375, 0
      %vm388 = vcmp.ne.s32.totalorder %v377, 0
      %vm389 = vcmp.ne.s32.totalorder %v379, 0
      %vm390 = vcmp.ne.s32.totalorder %v381, 0
      %vm391 = vcmp.ne.s32.totalorder %v383, 0
      %vm392 = vmand %vm328, %vm384
      %vm393 = vmand %vm329, %vm385
      %vm394 = vmand %vm330, %vm386
      %vm395 = vmand %vm331, %vm387
      %vm396 = vmand %vm332, %vm388
      %vm397 = vmand %vm333, %vm389
      %vm398 = vmand %vm334, %vm390
      %vm399 = vmand %vm335, %vm391
      %408 = vrot.lane.b32.xlu0 %v304, 1
      %v409 = vpop.permute.xlu0 %408
      %410 = vrot.lane.b32.xlu0 %v305, 1
      %v411 = vpop.permute.xlu0 %410
      %412 = vrot.lane.b32.xlu0 %v306, 1
      %v413 = vpop.permute.xlu0 %412
      %414 = vrot.lane.b32.xlu0 %v307, 1
      %v415 = vpop.permute.xlu0 %414
      %416 = vrot.lane.b32.xlu0 %v308, 1
      %v417 = vpop.permute.xlu0 %416
      %418 = vrot.lane.b32.xlu0 %v309, 1
      %v419 = vpop.permute.xlu0 %418
      %420 = vrot.lane.b32.xlu0 %v310, 1
      %v421 = vpop.permute.xlu0 %420
      %422 = vrot.lane.b32.xlu0 %v311, 1
      %v423 = vpop.permute.xlu0 %422
      %v432 = vmul.f32 %v304, %v409
      %v433 = vmul.f32 %v305, %v411
      %v434 = vmul.f32 %v306, %v413
      %v435 = vmul.f32 %v307, %v415
      %v436 = vmul.f32 %v308, %v417
      %v437 = vmul.f32 %v309, %v419
      %v438 = vmul.f32 %v310, %v421
      %v439 = vmul.f32 %v311, %v423
      %v440 = vsel %vm392, %v432, 0.0
      %v441 = vsel %vm393, %v433, 0.0
      %v442 = vsel %vm394, %v434, 0.0
      %v443 = vsel %vm395, %v435, 0.0
      %v444 = vsel %vm396, %v436, 0.0
      %v445 = vsel %vm397, %v437, 0.0
      %v446 = vsel %vm398, %v438, 0.0
      %v447 = vsel %vm399, %v439, 0.0
      %v448 = vsel %vm352, 1, 0
      %v449 = vsel %vm353, 1, 0
      %v450 = vsel %vm354, 1, 0
      %v451 = vsel %vm355, 1, 0
      %v452 = vsel %vm356, 1, 0
      %v453 = vsel %vm357, 1, 0
      %v454 = vsel %vm358, 1, 0
      %v455 = vsel %vm359, 1, 0
      %456 = vrot.lane.b32.xlu0 %v448, 1
      %v457 = vpop.permute.xlu0 %456
      %458 = vrot.lane.b32.xlu0 %v449, 1
      %v459 = vpop.permute.xlu0 %458
      %460 = vrot.lane.b32.xlu0 %v450, 1
      %v461 = vpop.permute.xlu0 %460
      %462 = vrot.lane.b32.xlu0 %v451, 1
      %v463 = vpop.permute.xlu0 %462
      %464 = vrot.lane.b32.xlu0 %v452, 1
      %v465 = vpop.permute.xlu0 %464
      %466 = vrot.lane.b32.xlu0 %v453, 1
      %v467 = vpop.permute.xlu0 %466
      %468 = vrot.lane.b32.xlu0 %v454, 1
      %v469 = vpop.permute.xlu0 %468
      %470 = vrot.lane.b32.xlu0 %v455, 1
      %v471 = vpop.permute.xlu0 %470
      %vm472 = vcmp.ne.s32.totalorder %v457, 0
      %vm473 = vcmp.ne.s32.totalorder %v459, 0
      %vm474 = vcmp.ne.s32.totalorder %v461, 0
      %vm475 = vcmp.ne.s32.totalorder %v463, 0
      %vm476 = vcmp.ne.s32.totalorder %v465, 0
      %vm477 = vcmp.ne.s32.totalorder %v467, 0
      %vm478 = vcmp.ne.s32.totalorder %v469, 0
      %vm479 = vcmp.ne.s32.totalorder %v471, 0
      %vm480 = vmand %vm328, %vm472
      %vm481 = vmand %vm329, %vm473
      %vm482 = vmand %vm330, %vm474
      %vm483 = vmand %vm331, %vm475
      %vm484 = vmand %vm332, %vm476
      %vm485 = vmand %vm333, %vm477
      %vm486 = vmand %vm334, %vm478
      %vm487 = vmand %vm335, %vm479
      %496 = vrot.lane.b32.xlu0 %v296, 1
      %v497 = vpop.permute.xlu0 %496
      %498 = vrot.lane.b32.xlu0 %v297, 1
      %v499 = vpop.permute.xlu0 %498
      %500 = vrot.lane.b32.xlu0 %v298, 1
      %v501 = vpop.permute.xlu0 %500
      %502 = vrot.lane.b32.xlu0 %v299, 1
      %v503 = vpop.permute.xlu0 %502
      %504 = vrot.lane.b32.xlu0 %v300, 1
      %v505 = vpop.permute.xlu0 %504
      %506 = vrot.lane.b32.xlu0 %v301, 1
      %v507 = vpop.permute.xlu0 %506
      %508 = vrot.lane.b32.xlu0 %v302, 1
      %v509 = vpop.permute.xlu0 %508
      %510 = vrot.lane.b32.xlu0 %v303, 1
      %v511 = vpop.permute.xlu0 %510
      %v520 = vmul.f32 %v304, %v497
      %v521 = vmul.f32 %v305, %v499
      %v522 = vmul.f32 %v306, %v501
      %v523 = vmul.f32 %v307, %v503
      %v524 = vmul.f32 %v308, %v505
      %v525 = vmul.f32 %v309, %v507
      %v526 = vmul.f32 %v310, %v509
      %v527 = vmul.f32 %v311, %v511
      %v528 = vsel %vm480, %v520, 0.0
      %v529 = vsel %vm481, %v521, 0.0
      %v530 = vsel %vm482, %v522, 0.0
      %v531 = vsel %vm483, %v523, 0.0
      %v532 = vsel %vm484, %v524, 0.0
      %v533 = vsel %vm485, %v525, 0.0
      %v534 = vsel %vm486, %v526, 0.0
      %v535 = vsel %vm487, %v527, 0.0
      %vm536 = vmand %vm352, %vm384
      %vm537 = vmand %vm353, %vm385
      %vm538 = vmand %vm354, %vm386
      %vm539 = vmand %vm355, %vm387
      %vm540 = vmand %vm356, %vm388
      %vm541 = vmand %vm357, %vm389
      %vm542 = vmand %vm358, %vm390
      %vm543 = vmand %vm359, %vm391
      %v544 = vmul.f32 %v296, %v409
      %v545 = vmul.f32 %v297, %v411
      %v546 = vmul.f32 %v298, %v413
      %v547 = vmul.f32 %v299, %v415
      %v548 = vmul.f32 %v300, %v417
      %v549 = vmul.f32 %v301, %v419
      %v550 = vmul.f32 %v302, %v421
      %v551 = vmul.f32 %v303, %v423
      %v552 = vsel %vm536, %v544, 0.0
      %v553 = vsel %vm537, %v545, 0.0
      %v554 = vsel %vm538, %v546, 0.0
      %v555 = vsel %vm539, %v547, 0.0
      %v556 = vsel %vm540, %v548, 0.0
      %v557 = vsel %vm541, %v549, 0.0
      %v558 = vsel %vm542, %v550, 0.0
      %v559 = vsel %vm543, %v551, 0.0
      %vm560 = vmand %vm352, %vm472
      %vm561 = vmand %vm353, %vm473
      %vm562 = vmand %vm354, %vm474
      %vm563 = vmand %vm355, %vm475
      %vm564 = vmand %vm356, %vm476
      %vm565 = vmand %vm357, %vm477
      %vm566 = vmand %vm358, %vm478
      %vm567 = vmand %vm359, %vm479
      %v568 = vmul.f32 %v296, %v497
      %v569 = vmul.f32 %v297, %v499
      %v570 = vmul.f32 %v298, %v501
      %v571 = vmul.f32 %v299, %v503
      %v572 = vmul.f32 %v300, %v505
      %v573 = vmul.f32 %v301, %v507
      %v574 = vmul.f32 %v302, %v509
      %v575 = vmul.f32 %v303, %v511
      %v576 = vsel %vm560, %v568, 0.0
      %v577 = vsel %vm561, %v569, 0.0
      %v578 = vsel %vm562, %v570, 0.0
      %v579 = vsel %vm563, %v571, 0.0
      %v580 = vsel %vm564, %v572, 0.0
      %v581 = vsel %vm565, %v573, 0.0
      %v582 = vsel %vm566, %v574, 0.0
      %v583 = vsel %vm567, %v575, 0.0
      %v584 = vmul.f32 %v280, 16.0
      %v585 = vmul.f32 %v281, 16.0
      %v586 = vmul.f32 %v282, 16.0
      %v587 = vmul.f32 %v283, 16.0
      %v588 = vmul.f32 %v284, 16.0
      %v589 = vmul.f32 %v285, 16.0
      %v590 = vmul.f32 %v286, 16.0
      %v591 = vmul.f32 %v287, 16.0
      %600 = vrot.lane.b32.xlu0 %v280, 1
      %v601 = vpop.permute.xlu0 %600
      %602 = vrot.lane.b32.xlu0 %v281, 1
      %v603 = vpop.permute.xlu0 %602
      %604 = vrot.lane.b32.xlu0 %v282, 1
      %v605 = vpop.permute.xlu0 %604
      %606 = vrot.lane.b32.xlu0 %v283, 1
      %v607 = vpop.permute.xlu0 %606
      %608 = vrot.lane.b32.xlu0 %v284, 1
      %v609 = vpop.permute.xlu0 %608
      %610 = vrot.lane.b32.xlu0 %v285, 1
      %v611 = vpop.permute.xlu0 %610
      %612 = vrot.lane.b32.xlu0 %v286, 1
      %v613 = vpop.permute.xlu0 %612
      %614 = vrot.lane.b32.xlu0 %v287, 1
      %v615 = vpop.permute.xlu0 %614
      %v624 = vadd.f32 %v584, %v601
      %v625 = vadd.f32 %v585, %v603
      %v626 = vadd.f32 %v586, %v605
      %v627 = vadd.f32 %v587, %v607
      %v628 = vadd.f32 %v588, %v609
      %v629 = vadd.f32 %v589, %v611
      %v630 = vadd.f32 %v590, %v613
      %v631 = vadd.f32 %v591, %v615
      %v632 = vcvt.f32.s32.to.zero.pseudo %v624
      %v633 = vcvt.f32.s32.to.zero.pseudo %v625
      %v634 = vcvt.f32.s32.to.zero.pseudo %v626
      %v635 = vcvt.f32.s32.to.zero.pseudo %v627
      %v636 = vcvt.f32.s32.to.zero.pseudo %v628
      %v637 = vcvt.f32.s32.to.zero.pseudo %v629
      %v638 = vcvt.f32.s32.to.zero.pseudo %v630
      %v639 = vcvt.f32.s32.to.zero.pseudo %v631
      %s640 = smul.u32 %s20, 256
      %v641 = vstv %s640
      %v642 = vsub.s32 %v632, %v641
      %v643 = vsub.s32 %v633, %v641
      %v644 = vsub.s32 %v634, %v641
      %v645 = vsub.s32 %v635, %v641
      %v646 = vsub.s32 %v636, %v641
      %v647 = vsub.s32 %v637, %v641
      %v648 = vsub.s32 %v638, %v641
      %v649 = vsub.s32 %v639, %v641
      %v650 = vlaneseq
      %v651 = vand.u32 %v650, 127
      %v652 = vadd.s32 %v651, 128
      %653 = vset.pattern.permute.xlu0 1
      %654 = vperm.xlu0 %653, %v642
      %v655 = vpop.permute.xlu0 %654
      %656 = vset.pattern.permute.xlu0 1
      %657 = vperm.xlu0 %656, %v643
      %v658 = vpop.permute.xlu0 %657
      %659 = vset.pattern.permute.xlu0 1
      %660 = vperm.xlu0 %659, %v644
      %v661 = vpop.permute.xlu0 %660
      %662 = vset.pattern.permute.xlu0 1
      %663 = vperm.xlu0 %662, %v645
      %v664 = vpop.permute.xlu0 %663
      %665 = vset.pattern.permute.xlu0 1
      %666 = vperm.xlu0 %665, %v646
      %v667 = vpop.permute.xlu0 %666
      %668 = vset.pattern.permute.xlu0 1
      %669 = vperm.xlu0 %668, %v647
      %v670 = vpop.permute.xlu0 %669
      %671 = vset.pattern.permute.xlu0 1
      %672 = vperm.xlu0 %671, %v648
      %v673 = vpop.permute.xlu0 %672
      %674 = vset.pattern.permute.xlu0 1
      %675 = vperm.xlu0 %674, %v649
      %v676 = vpop.permute.xlu0 %675
      %v677 = vsub.s32 %v651, %v655
      %v678 = vsub.s32 %v652, %v655
      %v679 = vsub.s32 %v651, %v658
      %v680 = vsub.s32 %v652, %v658
      %v681 = vsub.s32 %v651, %v661
      %v682 = vsub.s32 %v652, %v661
      %v683 = vsub.s32 %v651, %v664
      %v684 = vsub.s32 %v652, %v664
      %v685 = vsub.s32 %v651, %v667
      %v686 = vsub.s32 %v652, %v667
      %v687 = vsub.s32 %v651, %v670
      %v688 = vsub.s32 %v652, %v670
      %v689 = vsub.s32 %v651, %v673
      %v690 = vsub.s32 %v652, %v673
      %v691 = vsub.s32 %v651, %v676
      %v692 = vsub.s32 %v652, %v676
      %vm693 = vcmp.eq.s32.totalorder %v677, 0
      %vm694 = vcmp.eq.s32.totalorder %v678, 0
      %vm695 = vcmp.eq.s32.totalorder %v679, 0
      %vm696 = vcmp.eq.s32.totalorder %v680, 0
      %vm697 = vcmp.eq.s32.totalorder %v681, 0
      %vm698 = vcmp.eq.s32.totalorder %v682, 0
      %vm699 = vcmp.eq.s32.totalorder %v683, 0
      %vm700 = vcmp.eq.s32.totalorder %v684, 0
      %vm701 = vcmp.eq.s32.totalorder %v685, 0
      %vm702 = vcmp.eq.s32.totalorder %v686, 0
      %vm703 = vcmp.eq.s32.totalorder %v687, 0
      %vm704 = vcmp.eq.s32.totalorder %v688, 0
      %vm705 = vcmp.eq.s32.totalorder %v689, 0
      %vm706 = vcmp.eq.s32.totalorder %v690, 0
      %vm707 = vcmp.eq.s32.totalorder %v691, 0
      %vm708 = vcmp.eq.s32.totalorder %v692, 0
      %710 = vset.pattern.permute.xlu0 1
      %711 = vperm.xlu0 %710, %v440
      %v712 = vpop.permute.xlu0 %711
      %715 = vset.pattern.permute.xlu0 1
      %716 = vperm.xlu0 %715, %v441
      %v717 = vpop.permute.xlu0 %716
      %720 = vset.pattern.permute.xlu0 1
      %721 = vperm.xlu0 %720, %v442
      %v722 = vpop.permute.xlu0 %721
      %725 = vset.pattern.permute.xlu0 1
      %726 = vperm.xlu0 %725, %v443
      %v727 = vpop.permute.xlu0 %726
      %730 = vset.pattern.permute.xlu0 1
      %731 = vperm.xlu0 %730, %v444
      %v732 = vpop.permute.xlu0 %731
      %735 = vset.pattern.permute.xlu0 1
      %736 = vperm.xlu0 %735, %v445
      %v737 = vpop.permute.xlu0 %736
      %740 = vset.pattern.permute.xlu0 1
      %741 = vperm.xlu0 %740, %v446
      %v742 = vpop.permute.xlu0 %741
      %745 = vset.pattern.permute.xlu0 1
      %746 = vperm.xlu0 %745, %v447
      %v747 = vpop.permute.xlu0 %746
      %v749 = vsel %vm693, %v712, 0.0
      %v750 = vsel %vm694, %v712, 0.0
      %v751 = vsel %vm695, %v717, 0.0
      %v752 = vsel %vm696, %v717, 0.0
      %v753 = vsel %vm697, %v722, 0.0
      %v754 = vsel %vm698, %v722, 0.0
      %v755 = vsel %vm699, %v727, 0.0
      %v756 = vsel %vm700, %v727, 0.0
      %v757 = vsel %vm701, %v732, 0.0
      %v758 = vsel %vm702, %v732, 0.0
      %v759 = vsel %vm703, %v737, 0.0
      %v760 = vsel %vm704, %v737, 0.0
      %v761 = vsel %vm705, %v742, 0.0
      %v762 = vsel %vm706, %v742, 0.0
      %v763 = vsel %vm707, %v747, 0.0
      %v764 = vsel %vm708, %v747, 0.0
      %vm765 = vcmp.eq.s32.totalorder %v677, 1
      %vm766 = vcmp.eq.s32.totalorder %v678, 1
      %vm767 = vcmp.eq.s32.totalorder %v679, 1
      %vm768 = vcmp.eq.s32.totalorder %v680, 1
      %vm769 = vcmp.eq.s32.totalorder %v681, 1
      %vm770 = vcmp.eq.s32.totalorder %v682, 1
      %vm771 = vcmp.eq.s32.totalorder %v683, 1
      %vm772 = vcmp.eq.s32.totalorder %v684, 1
      %vm773 = vcmp.eq.s32.totalorder %v685, 1
      %vm774 = vcmp.eq.s32.totalorder %v686, 1
      %vm775 = vcmp.eq.s32.totalorder %v687, 1
      %vm776 = vcmp.eq.s32.totalorder %v688, 1
      %vm777 = vcmp.eq.s32.totalorder %v689, 1
      %vm778 = vcmp.eq.s32.totalorder %v690, 1
      %vm779 = vcmp.eq.s32.totalorder %v691, 1
      %vm780 = vcmp.eq.s32.totalorder %v692, 1
      %782 = vset.pattern.permute.xlu0 1
      %783 = vperm.xlu0 %782, %v528
      %v784 = vpop.permute.xlu0 %783
      %787 = vset.pattern.permute.xlu0 1
      %788 = vperm.xlu0 %787, %v529
      %v789 = vpop.permute.xlu0 %788
      %792 = vset.pattern.permute.xlu0 1
      %793 = vperm.xlu0 %792, %v530
      %v794 = vpop.permute.xlu0 %793
      %797 = vset.pattern.permute.xlu0 1
      %798 = vperm.xlu0 %797, %v531
      %v799 = vpop.permute.xlu0 %798
      %802 = vset.pattern.permute.xlu0 1
      %803 = vperm.xlu0 %802, %v532
      %v804 = vpop.permute.xlu0 %803
      %807 = vset.pattern.permute.xlu0 1
      %808 = vperm.xlu0 %807, %v533
      %v809 = vpop.permute.xlu0 %808
      %812 = vset.pattern.permute.xlu0 1
      %813 = vperm.xlu0 %812, %v534
      %v814 = vpop.permute.xlu0 %813
      %817 = vset.pattern.permute.xlu0 1
      %818 = vperm.xlu0 %817, %v535
      %v819 = vpop.permute.xlu0 %818
      %v821 = vsel %vm765, %v784, 0.0
      %v822 = vsel %vm766, %v784, 0.0
      %v823 = vsel %vm767, %v789, 0.0
      %v824 = vsel %vm768, %v789, 0.0
      %v825 = vsel %vm769, %v794, 0.0
      %v826 = vsel %vm770, %v794, 0.0
      %v827 = vsel %vm771, %v799, 0.0
      %v828 = vsel %vm772, %v799, 0.0
      %v829 = vsel %vm773, %v804, 0.0
      %v830 = vsel %vm774, %v804, 0.0
      %v831 = vsel %vm775, %v809, 0.0
      %v832 = vsel %vm776, %v809, 0.0
      %v833 = vsel %vm777, %v814, 0.0
      %v834 = vsel %vm778, %v814, 0.0
      %v835 = vsel %vm779, %v819, 0.0
      %v836 = vsel %vm780, %v819, 0.0
      %v837 = vadd.f32 %v749, %v821
      %v838 = vadd.f32 %v750, %v822
      %v839 = vadd.f32 %v751, %v823
      %v840 = vadd.f32 %v752, %v824
      %v841 = vadd.f32 %v753, %v825
      %v842 = vadd.f32 %v754, %v826
      %v843 = vadd.f32 %v755, %v827
      %v844 = vadd.f32 %v756, %v828
      %v845 = vadd.f32 %v757, %v829
      %v846 = vadd.f32 %v758, %v830
      %v847 = vadd.f32 %v759, %v831
      %v848 = vadd.f32 %v760, %v832
      %v849 = vadd.f32 %v761, %v833
      %v850 = vadd.f32 %v762, %v834
      %v851 = vadd.f32 %v763, %v835
      %v852 = vadd.f32 %v764, %v836
      %vm853 = vcmp.eq.s32.totalorder %v677, 16
      %vm854 = vcmp.eq.s32.totalorder %v678, 16
      %vm855 = vcmp.eq.s32.totalorder %v679, 16
      %vm856 = vcmp.eq.s32.totalorder %v680, 16
      %vm857 = vcmp.eq.s32.totalorder %v681, 16
      %vm858 = vcmp.eq.s32.totalorder %v682, 16
      %vm859 = vcmp.eq.s32.totalorder %v683, 16
      %vm860 = vcmp.eq.s32.totalorder %v684, 16
      %vm861 = vcmp.eq.s32.totalorder %v685, 16
      %vm862 = vcmp.eq.s32.totalorder %v686, 16
      %vm863 = vcmp.eq.s32.totalorder %v687, 16
      %vm864 = vcmp.eq.s32.totalorder %v688, 16
      %vm865 = vcmp.eq.s32.totalorder %v689, 16
      %vm866 = vcmp.eq.s32.totalorder %v690, 16
      %vm867 = vcmp.eq.s32.totalorder %v691, 16
      %vm868 = vcmp.eq.s32.totalorder %v692, 16
      %870 = vset.pattern.permute.xlu0 1
      %871 = vperm.xlu0 %870, %v552
      %v872 = vpop.permute.xlu0 %871
      %875 = vset.pattern.permute.xlu0 1
      %876 = vperm.xlu0 %875, %v553
      %v877 = vpop.permute.xlu0 %876
      %880 = vset.pattern.permute.xlu0 1
      %881 = vperm.xlu0 %880, %v554
      %v882 = vpop.permute.xlu0 %881
      %885 = vset.pattern.permute.xlu0 1
      %886 = vperm.xlu0 %885, %v555
      %v887 = vpop.permute.xlu0 %886
      %890 = vset.pattern.permute.xlu0 1
      %891 = vperm.xlu0 %890, %v556
      %v892 = vpop.permute.xlu0 %891
      %895 = vset.pattern.permute.xlu0 1
      %896 = vperm.xlu0 %895, %v557
      %v897 = vpop.permute.xlu0 %896
      %900 = vset.pattern.permute.xlu0 1
      %901 = vperm.xlu0 %900, %v558
      %v902 = vpop.permute.xlu0 %901
      %905 = vset.pattern.permute.xlu0 1
      %906 = vperm.xlu0 %905, %v559
      %v907 = vpop.permute.xlu0 %906
      %v909 = vsel %vm853, %v872, 0.0
      %v910 = vsel %vm854, %v872, 0.0
      %v911 = vsel %vm855, %v877, 0.0
      %v912 = vsel %vm856, %v877, 0.0
      %v913 = vsel %vm857, %v882, 0.0
      %v914 = vsel %vm858, %v882, 0.0
      %v915 = vsel %vm859, %v887, 0.0
      %v916 = vsel %vm860, %v887, 0.0
      %v917 = vsel %vm861, %v892, 0.0
      %v918 = vsel %vm862, %v892, 0.0
      %v919 = vsel %vm863, %v897, 0.0
      %v920 = vsel %vm864, %v897, 0.0
      %v921 = vsel %vm865, %v902, 0.0
      %v922 = vsel %vm866, %v902, 0.0
      %v923 = vsel %vm867, %v907, 0.0
      %v924 = vsel %vm868, %v907, 0.0
      %v925 = vadd.f32 %v837, %v909
      %v926 = vadd.f32 %v838, %v910
      %v927 = vadd.f32 %v839, %v911
      %v928 = vadd.f32 %v840, %v912
      %v929 = vadd.f32 %v841, %v913
      %v930 = vadd.f32 %v842, %v914
      %v931 = vadd.f32 %v843, %v915
      %v932 = vadd.f32 %v844, %v916
      %v933 = vadd.f32 %v845, %v917
      %v934 = vadd.f32 %v846, %v918
      %v935 = vadd.f32 %v847, %v919
      %v936 = vadd.f32 %v848, %v920
      %v937 = vadd.f32 %v849, %v921
      %v938 = vadd.f32 %v850, %v922
      %v939 = vadd.f32 %v851, %v923
      %v940 = vadd.f32 %v852, %v924
      %vm941 = vcmp.eq.s32.totalorder %v677, 17
      %vm942 = vcmp.eq.s32.totalorder %v678, 17
      %vm943 = vcmp.eq.s32.totalorder %v679, 17
      %vm944 = vcmp.eq.s32.totalorder %v680, 17
      %vm945 = vcmp.eq.s32.totalorder %v681, 17
      %vm946 = vcmp.eq.s32.totalorder %v682, 17
      %vm947 = vcmp.eq.s32.totalorder %v683, 17
      %vm948 = vcmp.eq.s32.totalorder %v684, 17
      %vm949 = vcmp.eq.s32.totalorder %v685, 17
      %vm950 = vcmp.eq.s32.totalorder %v686, 17
      %vm951 = vcmp.eq.s32.totalorder %v687, 17
      %vm952 = vcmp.eq.s32.totalorder %v688, 17
      %vm953 = vcmp.eq.s32.totalorder %v689, 17
      %vm954 = vcmp.eq.s32.totalorder %v690, 17
      %vm955 = vcmp.eq.s32.totalorder %v691, 17
      %vm956 = vcmp.eq.s32.totalorder %v692, 17
      %958 = vset.pattern.permute.xlu0 1
      %959 = vperm.xlu0 %958, %v576
      %v960 = vpop.permute.xlu0 %959
      %963 = vset.pattern.permute.xlu0 1
      %964 = vperm.xlu0 %963, %v577
      %v965 = vpop.permute.xlu0 %964
      %968 = vset.pattern.permute.xlu0 1
      %969 = vperm.xlu0 %968, %v578
      %v970 = vpop.permute.xlu0 %969
      %973 = vset.pattern.permute.xlu0 1
      %974 = vperm.xlu0 %973, %v579
      %v975 = vpop.permute.xlu0 %974
      %978 = vset.pattern.permute.xlu0 1
      %979 = vperm.xlu0 %978, %v580
      %v980 = vpop.permute.xlu0 %979
      %983 = vset.pattern.permute.xlu0 1
      %984 = vperm.xlu0 %983, %v581
      %v985 = vpop.permute.xlu0 %984
      %988 = vset.pattern.permute.xlu0 1
      %989 = vperm.xlu0 %988, %v582
      %v990 = vpop.permute.xlu0 %989
      %993 = vset.pattern.permute.xlu0 1
      %994 = vperm.xlu0 %993, %v583
      %v995 = vpop.permute.xlu0 %994
      %v997 = vsel %vm941, %v960, 0.0
      %v998 = vsel %vm942, %v960, 0.0
      %v999 = vsel %vm943, %v965, 0.0
      %v1000 = vsel %vm944, %v965, 0.0
      %v1001 = vsel %vm945, %v970, 0.0
      %v1002 = vsel %vm946, %v970, 0.0
      %v1003 = vsel %vm947, %v975, 0.0
      %v1004 = vsel %vm948, %v975, 0.0
      %v1005 = vsel %vm949, %v980, 0.0
      %v1006 = vsel %vm950, %v980, 0.0
      %v1007 = vsel %vm951, %v985, 0.0
      %v1008 = vsel %vm952, %v985, 0.0
      %v1009 = vsel %vm953, %v990, 0.0
      %v1010 = vsel %vm954, %v990, 0.0
      %v1011 = vsel %vm955, %v995, 0.0
      %v1012 = vsel %vm956, %v995, 0.0
      %v1013 = vadd.f32 %v925, %v997
      %v1014 = vadd.f32 %v926, %v998
      %v1015 = vadd.f32 %v927, %v999
      %v1016 = vadd.f32 %v928, %v1000
      %v1017 = vadd.f32 %v929, %v1001
      %v1018 = vadd.f32 %v930, %v1002
      %v1019 = vadd.f32 %v931, %v1003
      %v1020 = vadd.f32 %v932, %v1004
      %v1021 = vadd.f32 %v933, %v1005
      %v1022 = vadd.f32 %v934, %v1006
      %v1023 = vadd.f32 %v935, %v1007
      %v1024 = vadd.f32 %v936, %v1008
      %v1025 = vadd.f32 %v937, %v1009
      %v1026 = vadd.f32 %v938, %v1010
      %v1027 = vadd.f32 %v939, %v1011
      %v1028 = vadd.f32 %v940, %v1012
      %v1029 = vld [vmem:[%s224] sm:$0xff]
      %v1030 = vld [vmem:[%s224 + $0x8] sm:$0xff]
      %v1031 = vld [vmem:[%s224 + $0x10] sm:$0xff]
      %v1032 = vld [vmem:[%s224 + $0x18] sm:$0xff]
      %v1033 = vld [vmem:[%s224 + $0x20] sm:$0xff]
      %v1034 = vld [vmem:[%s224 + $0x28] sm:$0xff]
      %v1035 = vld [vmem:[%s224 + $0x30] sm:$0xff]
      %v1036 = vld [vmem:[%s224 + $0x38] sm:$0xff]
      %v1037 = vpack.c.bf16 %v1015, %v1013
      %v1038 = vpack.c.bf16 %v1016, %v1014
      %v1039 = vpack.c.bf16 %v1019, %v1017
      %v1040 = vpack.c.bf16 %v1020, %v1018
      %v1041 = vpack.c.bf16 %v1023, %v1021
      %v1042 = vpack.c.bf16 %v1024, %v1022
      %v1043 = vpack.c.bf16 %v1027, %v1025
      %v1044 = vpack.c.bf16 %v1028, %v1026
      %v1045 = vld [vmem:[%s214] sm:$0xf]
      %v1046 = vld [vmem:[%s214 + $0x4] sm:$0xf]
      %v1047 = vld [vmem:[%s214 + $0x8] sm:$0xf]
      %v1048 = vld [vmem:[%s214 + $0xc] sm:$0xf]
      %v1049 = vld [vmem:[%s214 + $0x10] sm:$0xf]
      %v1050 = vld [vmem:[%s214 + $0x14] sm:$0xf]
      %v1051 = vld [vmem:[%s214 + $0x18] sm:$0xf]
      %v1052 = vld [vmem:[%s214 + $0x1c] sm:$0xf]
      %v1053 = vld [vmem:[%s214 + $0x20] sm:$0xf]
      %v1054 = vld [vmem:[%s214 + $0x24] sm:$0xf]
      %v1055 = vld [vmem:[%s214 + $0x28] sm:$0xf]
      %v1056 = vld [vmem:[%s214 + $0x2c] sm:$0xf]
      %v1057 = vld [vmem:[%s214 + $0x30] sm:$0xf]
      %v1058 = vld [vmem:[%s214 + $0x34] sm:$0xf]
      %v1059 = vld [vmem:[%s214 + $0x38] sm:$0xf]
      %v1060 = vld [vmem:[%s214 + $0x3c] sm:$0xf]
      %v1061 = vld [vmem:[%s214 + $0x40] sm:$0xf]
      %v1062 = vld [vmem:[%s214 + $0x44] sm:$0xf]
      %v1063 = vld [vmem:[%s214 + $0x48] sm:$0xf]
      %v1064 = vld [vmem:[%s214 + $0x4c] sm:$0xf]
      %v1065 = vld [vmem:[%s214 + $0x50] sm:$0xf]
      %v1066 = vld [vmem:[%s214 + $0x54] sm:$0xf]
      %v1067 = vld [vmem:[%s214 + $0x58] sm:$0xf]
      %v1068 = vld [vmem:[%s214 + $0x5c] sm:$0xf]
      %v1069 = vld [vmem:[%s214 + $0x60] sm:$0xf]
      %v1070 = vld [vmem:[%s214 + $0x64] sm:$0xf]
      %v1071 = vld [vmem:[%s214 + $0x68] sm:$0xf]
      %v1072 = vld [vmem:[%s214 + $0x6c] sm:$0xf]
      %v1073 = vld [vmem:[%s214 + $0x70] sm:$0xf]
      %v1074 = vld [vmem:[%s214 + $0x74] sm:$0xf]
      %v1075 = vld [vmem:[%s214 + $0x78] sm:$0xf]
      %v1076 = vld [vmem:[%s214 + $0x7c] sm:$0xf]
      %v1109 = vunpack.c.l.b16 %v1045
      %v1110 = vunpack.c.l.b16 %v1046
      %v1111 = vunpack.c.l.b16 %v1047
      %v1112 = vunpack.c.l.b16 %v1048
      %v1113 = vunpack.c.l.b16 %v1049
      %v1114 = vunpack.c.l.b16 %v1050
      %v1115 = vunpack.c.l.b16 %v1051
      %v1116 = vunpack.c.l.b16 %v1052
      %v1117 = vunpack.c.l.b16 %v1053
      %v1118 = vunpack.c.l.b16 %v1054
      %v1119 = vunpack.c.l.b16 %v1055
      %v1120 = vunpack.c.l.b16 %v1056
      %v1121 = vunpack.c.l.b16 %v1057
      %v1122 = vunpack.c.l.b16 %v1058
      %v1123 = vunpack.c.l.b16 %v1059
      %v1124 = vunpack.c.l.b16 %v1060
      %v1125 = vunpack.c.l.b16 %v1061
      %v1126 = vunpack.c.l.b16 %v1062
      %v1127 = vunpack.c.l.b16 %v1063
      %v1128 = vunpack.c.l.b16 %v1064
      %v1129 = vunpack.c.l.b16 %v1065
      %v1130 = vunpack.c.l.b16 %v1066
      %v1131 = vunpack.c.l.b16 %v1067
      %v1132 = vunpack.c.l.b16 %v1068
      %v1133 = vunpack.c.l.b16 %v1069
      %v1134 = vunpack.c.l.b16 %v1070
      %v1135 = vunpack.c.l.b16 %v1071
      %v1136 = vunpack.c.l.b16 %v1072
      %v1137 = vunpack.c.l.b16 %v1073
      %v1138 = vunpack.c.l.b16 %v1074
      %v1139 = vunpack.c.l.b16 %v1075
      %v1140 = vunpack.c.l.b16 %v1076
      %v1141 = vpack.c.b16 %v1110, %v1109
      %v1142 = vpack.c.b16 %v1112, %v1111
      %v1143 = vpack.c.b16 %v1114, %v1113
      %v1144 = vpack.c.b16 %v1116, %v1115
      %v1145 = vpack.c.b16 %v1118, %v1117
      %v1146 = vpack.c.b16 %v1120, %v1119
      %v1147 = vpack.c.b16 %v1122, %v1121
      %v1148 = vpack.c.b16 %v1124, %v1123
      %v1149 = vpack.c.b16 %v1126, %v1125
      %v1150 = vpack.c.b16 %v1128, %v1127
      %v1151 = vpack.c.b16 %v1130, %v1129
      %v1152 = vpack.c.b16 %v1132, %v1131
      %v1153 = vpack.c.b16 %v1134, %v1133
      %v1154 = vpack.c.b16 %v1136, %v1135
      %v1155 = vpack.c.b16 %v1138, %v1137
      %v1156 = vpack.c.b16 %v1140, %v1139
      %1173 = vmatprep.subr.bf16.mxu0 0
      %1174 = vmatpush1.bf16.msra.mxu0 %v1141
      %1175 = vmatprep.subr.bf16.mxu0 0
      %1176 = vmatpush1.bf16.msra.mxu0 %v1142
      %1177 = vmatprep.subr.bf16.mxu0 0
      %1178 = vmatpush1.bf16.msra.mxu0 %v1143
      %1179 = vmatprep.subr.bf16.mxu0 0
      %1180 = vmatpush1.bf16.msra.mxu0 %v1144
      %1181 = vmatprep.subr.bf16.mxu0 0
      %1182 = vmatpush1.bf16.msra.mxu0 %v1145
      %1183 = vmatprep.subr.bf16.mxu0 0
      %1184 = vmatpush1.bf16.msra.mxu0 %v1146
      %1185 = vmatprep.subr.bf16.mxu0 0
      %1186 = vmatpush1.bf16.msra.mxu0 %v1147
      %1187 = vmatprep.subr.bf16.mxu0 0
      %1188 = vmatpush1.bf16.msra.mxu0 %v1148
      %1189 = vmatprep.subr.bf16.mxu0 0
      %1190 = vmatpush1.bf16.msra.mxu0 %v1149
      %1191 = vmatprep.subr.bf16.mxu0 0
      %1192 = vmatpush1.bf16.msra.mxu0 %v1150
      %1193 = vmatprep.subr.bf16.mxu0 0
      %1194 = vmatpush1.bf16.msra.mxu0 %v1151
      %1195 = vmatprep.subr.bf16.mxu0 0
      %1196 = vmatpush1.bf16.msra.mxu0 %v1152
      %1197 = vmatprep.subr.bf16.mxu0 0
      %1198 = vmatpush1.bf16.msra.mxu0 %v1153
      %1199 = vmatprep.subr.bf16.mxu0 0
      %1200 = vmatpush1.bf16.msra.mxu0 %v1154
      %1201 = vmatprep.subr.bf16.mxu0 0
      %1202 = vmatpush1.bf16.msra.mxu0 %v1155
      %1203 = vmatprep.subr.bf16.mxu0 0
      %1204 = vmatpush1.bf16.msra.mxu0 %v1156
      %1205 = vmatprep.mubr.bf16.mxu0 %v1038
      %1206 = vmatmul.mubr.bf16.gmra.mrb[0].mxu0 %v1037
      %v1207 = vpop.f32.mrb[0].mxu0
      %v1208 = vadd.f32 0.0, %v1207
      %v1209 = vpop.f32.mrb[0].mxu0
      %v1210 = vpop.f32.mrb[0].mxu0
      %v1211 = vadd.f32 0.0, %v1210
      %v1212 = vpop.f32.mrb[0].mxu0
      %1213 = vmatprep.mubr.bf16.mxu0 %v1040
      %1214 = vmatmul.mubr.bf16.gmra.mrb[0].mxu0 %v1039
      %v1215 = vpop.f32.mrb[0].mxu0
      %v1216 = vadd.f32 0.0, %v1215
      %v1217 = vpop.f32.mrb[0].mxu0
      %v1218 = vpop.f32.mrb[0].mxu0
      %v1219 = vadd.f32 0.0, %v1218
      %v1220 = vpop.f32.mrb[0].mxu0
      %1221 = vmatprep.mubr.bf16.mxu0 %v1042
      %1222 = vmatmul.mubr.bf16.gmra.mrb[0].mxu0 %v1041
      %v1223 = vpop.f32.mrb[0].mxu0
      %v1224 = vadd.f32 0.0, %v1223
      %v1225 = vpop.f32.mrb[0].mxu0
      %v1226 = vpop.f32.mrb[0].mxu0
      %v1227 = vadd.f32 0.0, %v1226
      %v1228 = vpop.f32.mrb[0].mxu0
      %1229 = vmatprep.mubr.bf16.mxu0 %v1044
      %1230 = vmatmul.mubr.bf16.gmra.mrb[0].mxu0 %v1043
      %v1231 = vpop.f32.mrb[0].mxu0
      %v1232 = vadd.f32 0.0, %v1231
      %v1233 = vpop.f32.mrb[0].mxu0
      %v1234 = vpop.f32.mrb[0].mxu0
      %v1235 = vadd.f32 0.0, %v1234
      %v1236 = vpop.f32.mrb[0].mxu0
      %1237 = vdwg.mxu0
      %v1238 = vadd.f32 %v1029, %v1208
      %v1239 = vadd.f32 %v1030, %v1211
      %v1240 = vadd.f32 %v1031, %v1216
      %v1241 = vadd.f32 %v1032, %v1219
      %v1242 = vadd.f32 %v1033, %v1224
      %v1243 = vadd.f32 %v1034, %v1227
      %v1244 = vadd.f32 %v1035, %v1232
      %v1245 = vadd.f32 %v1036, %v1235
      %vm1246 = vcmask 31744
      %1247 = vst.msk [vmem:[%s224] sm:$0xff] %vm1246, %v1238
      %1248 = vst.msk [vmem:[%s224 + $0x8] sm:$0xff] %vm1246, %v1239
      %1249 = vst.msk [vmem:[%s224 + $0x10] sm:$0xff] %vm1246, %v1240
      %1250 = vst.msk [vmem:[%s224 + $0x18] sm:$0xff] %vm1246, %v1241
      %1251 = vst.msk [vmem:[%s224 + $0x20] sm:$0xff] %vm1246, %v1242
      %1252 = vst.msk [vmem:[%s224 + $0x28] sm:$0xff] %vm1246, %v1243
      %1253 = vst.msk [vmem:[%s224 + $0x30] sm:$0xff] %vm1246, %v1244
      %1254 = vst.msk [vmem:[%s224 + $0x38] sm:$0xff] %vm1246, %v1245
      %s1255 = smul.u32 8, %s19
      %p1256 = scmp.lt.s32.totalorder %s18, 1
      %s1257 = scalar_select %p1256, %s18, 1
      %p1258 = scmp.lt.s32.totalorder %s1255, 7
      %s1259 = scalar_select %p1258, %s1255, 7
      %s1260 = smul.addr %s1257, 8
      %s1261 = sadd.s32 %s1259, %s1260
      %s1262 = smul.addr %s1261, 8
      %s1263 = scalar_lea.vmem %s2, %s1262
      // Predicated region
      $region33: #{tpu_custom_call.1} parent=27 // pred_check
        %p1264 = pneg %p108
      $region34: #{tpu_custom_call.1} parent=27 // pred_check_branch
        %1266 = sbr.rel (%p1264) target = $region36
      $region35: #{tpu_custom_call.1} parent=27 // pred_region
        %s1267 = smul.u32 8, %s19
      $region36: #{tpu_custom_call.1} parent=27 // pred_fallthru
        _
    $region28: #{tpu_custom_call.1} parent=5 // pred_fallthru
      _
    %p1268 = scmp.le.s32.totalorder 2, %s8
    // Predicated region
    $region37: #{tpu_custom_call.1} parent=5 // pred_check
      %p1269 = pneg %p1268
    $region38: #{tpu_custom_call.1} parent=5 // pred_check_branch
      %1271 = sbr.rel (%p1269) target = $region40
    $region39: #{tpu_custom_call.1} parent=5 // pred_region
      %s1272 = ssub.s32 %s8, 2
      // Predicated region
      $region41: #{tpu_custom_call.1} parent=39 // pred_check
        %p1273 = pneg %p114
      $region42: #{tpu_custom_call.1} parent=39 // pred_check_branch
        %1275 = sbr.rel (%p1273) target = $region44
      $region43: #{tpu_custom_call.1} parent=39 // pred_region
        %s1276 = smul.u32 8, %s22
        %p1277 = scmp.lt.s32.totalorder %s21, 1
        %s1278 = scalar_select %p1277, %s21, 1
        %p1279 = scmp.lt.s32.totalorder %s1276, 7
        %s1280 = scalar_select %p1279, %s1276, 7
        %s1281 = smul.addr %s1278, 8
        %s1282 = sadd.s32 %s1280, %s1281
        %s1283 = smul.addr %s1282, 8
        %s1284 = scalar_lea.vmem %s2, %s1283
      $region44: #{tpu_custom_call.1} parent=39 // pred_fallthru
        _
    $region40: #{tpu_custom_call.1} parent=5 // pred_fallthru
      _
  $region6: #{tpu_custom_call.1} parent=0 // loop_footer
    %s12 = sadd.s32 1, %s8
  $region7: #{tpu_custom_call.1} parent=0 // loop_footer_branch
    %7 = sbr.rel target = $region3
  $region8: #{tpu_custom_call.1} parent=0 // loop_exit
    _

</llo_original>
